<compile_context>
chip_gen: v7x
topology: tpu7x:2x2x1
jax: 0.10.0
libtpu: 0.0.40
codegen_flags: <defaults>
</compile_context>

<pallas_src>
import functools

import numpy as np
import jax
import jax.numpy as jnp
from jax import lax
from jax.experimental import pallas as pl
from jax.experimental.pallas import tpu as pltpu

LMBDA = 100.0
RESOLVANT_GAMMA = 0.5


# ----------------------------------------------------------------------------
# Kernel: projections + mask + Gram + assembly + Bb*K simultaneous GJ solves
# ----------------------------------------------------------------------------
def _fmnet_kernel(lmbda, gamma, K, Bb,
                  tiles_ref, rowm_ref, blk_ref, exl_ref, eyl_ref,
                  etx_ref, fx_ref, ety_ref, fy_ref, out_ref):
    f32 = jnp.float32
    K2 = 2 * K
    N = Bb * K * K  # lane extent; lane n encodes (b, i, a) = (n//K^2, (n//K)%K, n%K)

    # ---- cheap per-step index constants (2 iotas) ----
    a_lane = lax.rem(lax.broadcasted_iota(jnp.int32, (1, N), 1), K)   # a(n)
    c_sub = lax.broadcasted_iota(jnp.int32, (K2, 1), 0)               # augmented column idx

    # ---- resolvent mask d[n] = D[b(n)][i(n), a(n)]  (per-lane VALU) ----
    ex = exl_ref[0]           # [1, N]  scaled evals_x at a(n)
    ey = eyl_ref[0]           # [1, N]  scaled evals_y at i(n)
    if gamma == 0.5:
        gx = jnp.sqrt(ex)
        gy = jnp.sqrt(ey)
    else:
        eps = 1e-12
        gx = jnp.exp(gamma * jnp.log(jnp.maximum(ex, eps)))
        gy = jnp.exp(gamma * jnp.log(jnp.maximum(ey, eps)))
    inv_x = 1.0 / (gx * gx + 1.0)
    inv_y = 1.0 / (gy * gy + 1.0)
    d_re = gy * inv_y - gx * inv_x
    d_im = inv_y - inv_x
    d = d_re * d_re + d_im * d_im                                     # [1, N]

    # ---- projections + Gram + lane placement (MXU) ----
    # full[c, n] = AAt_b(n)[c, a(n)] for c < K,  BAt_b(n)[c-K, a(n)] for c >= K
    full = None
    nt = (((1,), (1,)), ((), ()))                                     # X @ Y^T
    for b in range(Bb):
        A_b = jnp.dot(etx_ref[b], fx_ref[b], preferred_element_type=f32)    # [K, C]
        Bm_b = jnp.dot(ety_ref[b], fy_ref[b], preferred_element_type=f32)   # [K, C]
        AB_b = jnp.concatenate([A_b, Bm_b], axis=0)                          # [2K, C]
        G_b = lax.dot_general(AB_b, A_b, nt, preferred_element_type=f32)     # [2K, K] = [AAt; BAt]
        contrib = jnp.dot(G_b, tiles_ref[b], preferred_element_type=f32)     # [2K, N]
        full = contrib if full is None else full + contrib

    # ---- assemble augmented panel S[c, n] (lane-major) ----
    rhs = jnp.sum(full * rowm_ref[...], axis=0, keepdims=True)        # [1, N] = BAt[i(n), a(n)]
    reg = jnp.where(c_sub == a_lane, lmbda * d, 0.0)                   # lambda * diag(D_i)
    S = jnp.where(c_sub == K, rhs, full + reg)                         # row K holds the RHS
    # rows K+1 .. 2K-1 are don't-care filler living in the same sublane tile.

    # ---- Gauss-Jordan on all Bb*K systems simultaneously ----
    def gj_step(p, S):
        amask = a_lane == p                                            # pivot-row lanes
        pivrow = jnp.dot(jnp.where(amask, S, 0.0), blk_ref[...],
                         preferred_element_type=f32)                   # pivot row bcast per system
        csel = c_sub == p
        piv = jnp.sum(jnp.where(csel, pivrow, 0.0), axis=0, keepdims=True)   # M[p, p]
        fac = jnp.sum(jnp.where(csel, S, 0.0), axis=0, keepdims=True)        # M[a(n), p]
        piv = jnp.where(jnp.abs(piv) < 1e-30, 1e-30, piv)              # zero-pivot guard
        inv = pl.reciprocal(piv, approx=True)
        inv = inv * (2.0 - piv * inv)                                  # one Newton step
        pivn = pivrow * inv
        return jnp.where(amask, pivn, S - fac * pivn)

    S = lax.fori_loop(0, K, gj_step, S, unroll=True)

    # ---- solution x_{(b,i)}[a] sits in augmented column K ----
    sol = jnp.sum(jnp.where(c_sub == K, S, 0.0), axis=0, keepdims=True)      # [1, N]
    out_ref[0] = sol


# ----------------------------------------------------------------------------
# Host-side constant selection matrices (depend only on Bb, K)
# ----------------------------------------------------------------------------
def _panel_constants(Bb, K):
    N = Bb * K * K
    n = np.arange(N)
    b_of = n // (K * K)
    i_of = (n // K) % K
    a_of = n % K
    tiles = np.zeros((Bb, K, N), np.float32)       # tiles[b, j, n] = (b(n)==b) & (a(n)==j)
    tiles[b_of, a_of, n] = 1.0
    rowm = np.zeros((2 * K, N), np.float32)        # rowm[j, n] = (j == K + i(n))
    rowm[K + i_of, n] = 1.0
    sys_id = n // K                                # system index s = b*K + i
    blk = (sys_id[:, None] == sys_id[None, :]).astype(np.float32)   # same-system bcast
    return jnp.asarray(tiles), jnp.asarray(rowm), jnp.asarray(blk)


def _pick_bb(B, K):
    """Largest divisor of B with Bb*K*K <= 128 (lane-dense grid steps)."""
    per = K * K
    bb = 1
    for d in range(1, B + 1):
        if B % d == 0 and d * per <= 128:
            bb = d
    return bb


# ----------------------------------------------------------------------------
# Wrapper
# ----------------------------------------------------------------------------
def _compute_functional_map(feat_x, feat_y, evals_x, evals_y,
                            evecs_trans_x, evecs_trans_y, lmbda, gamma):
    f32 = jnp.float32
    B, Vx, C = feat_x.shape
    _, Vy, _ = feat_y.shape
    K = evals_x.shape[1]

    Bb = _pick_bb(B, K)
    G = B // Bb
    N = Bb * K * K
    K2 = 2 * K

    feat_x = feat_x.astype(f32)
    feat_y = feat_y.astype(f32)
    etx = evecs_trans_x.astype(f32)
    ety = evecs_trans_y.astype(f32)
    evx = evals_x.astype(f32)
    evy = evals_y.astype(f32)

    # Per-batch scale (torch: max over both spectra of the batch item), then
    # lane-dense layouts: ex_lane[n] = evals_x[b(n), a(n)]/s, ey_lane[n] = evals_y[b(n), i(n)]/s.
    scale = jnp.maximum(jnp.max(evx, axis=1), jnp.max(evy, axis=1))
    scale = jnp.maximum(scale, 1e-30)[:, None]
    exn = evx / scale
    eyn = evy / scale
    ex_lane = jnp.broadcast_to(exn[:, None, :], (B, K, K)).reshape(G, 1, N)
    ey_lane = jnp.broadcast_to(eyn[:, :, None], (B, K, K)).reshape(G, 1, N)

    tiles, rowm, blk = _panel_constants(Bb, K)

    kernel = functools.partial(_fmnet_kernel, float(lmbda), float(gamma), K, Bb)
    out = pl.pallas_call(
        kernel,
        grid=(G,),
        in_specs=[
            pl.BlockSpec((Bb, K, N), lambda g: (0, 0, 0)),       # tiles (const, VMEM resident)
            pl.BlockSpec((K2, N), lambda g: (0, 0)),             # rowm  (const)
            pl.BlockSpec((N, N), lambda g: (0, 0)),              # blk   (const)
            pl.BlockSpec((1, 1, N), lambda g: (g, 0, 0)),        # ex_lane
            pl.BlockSpec((1, 1, N), lambda g: (g, 0, 0)),        # ey_lane
            pl.BlockSpec((Bb, K, Vx), lambda g: (g, 0, 0)),      # evecs_trans_x
            pl.BlockSpec((Bb, Vx, C), lambda g: (g, 0, 0)),      # feat_x
            pl.BlockSpec((Bb, K, Vy), lambda g: (g, 0, 0)),      # evecs_trans_y
            pl.BlockSpec((Bb, Vy, C), lambda g: (g, 0, 0)),      # feat_y
        ],
        out_specs=pl.BlockSpec((1, 1, N), lambda g: (g, 0, 0)),
        out_shape=jax.ShapeDtypeStruct((G, 1, N), f32),
        compiler_params=pltpu.CompilerParams(dimension_semantics=("parallel",)),
    )(tiles, rowm, blk, ex_lane, ey_lane, etx, feat_x, ety, feat_y)

    return out.reshape(B, K, K)


def forward(feat_x, feat_y, evals_x, evals_y, evecs_trans_x, evecs_trans_y,
            lmbda=LMBDA, resolvant_gamma=RESOLVANT_GAMMA, bidirectional=False):
    Cxy = _compute_functional_map(feat_x, feat_y, evals_x, evals_y,
                                  evecs_trans_x, evecs_trans_y, lmbda, resolvant_gamma)
    if bidirectional:
        Cyx = _compute_functional_map(feat_y, feat_x, evals_y, evals_x,
                                      evecs_trans_y, evecs_trans_x, lmbda, resolvant_gamma)
    else:
        Cyx = None
    return Cxy, Cyx


# ----------------------------------------------------------------------------
# Pure-JAX reference (mirrors the torch forward exactly) for sanity checking
# ----------------------------------------------------------------------------
def _forward_ref(feat_x, feat_y, evals_x, evals_y, etx, ety,
                 lmbda=LMBDA, gamma=RESOLVANT_GAMMA):
    A = jnp.einsum('bkv,bvc->bkc', etx, feat_x)
    Bm = jnp.einsum('bkv,bvc->bkc', ety, feat_y)

    def mask_one(e1, e2):
        s = jnp.maximum(jnp.max(e1), jnp.max(e2))
        g1 = (e1 / s) ** gamma
        g2 = (e2 / s) ** gamma
        m_re = g2[:, None] / (g2[:, None] ** 2 + 1) - g1[None, :] / (g1[None, :] ** 2 + 1)
        m_im = 1.0 / (g2[:, None] ** 2 + 1) - 1.0 / (g1[None, :] ** 2 + 1)
        return m_re ** 2 + m_im ** 2

    D = jax.vmap(mask_one)(evals_x, evals_y)                     # [B, K, K]
    AAt = jnp.einsum('bkc,blc->bkl', A, A)
    BAt = jnp.einsum('bkc,blc->bkl', Bm, A)
    K = evals_x.shape[1]
    eye = jnp.eye(K, dtype=A.dtype)
    M = AAt[:, None, :, :] + lmbda * D[:, :, :, None] * eye[None, None, :, :]
    rhs = BAt[:, :, :, None]
    sol = jnp.linalg.solve(M, rhs)[..., 0]                       # [B, K, K]
    return sol


if __name__ == "__main__":
    B, Vx, Vy, C, K = 2, 32, 32, 16, 8

    key = jax.random.PRNGKey(0)
    k1, k2, k3, k4, k5, k6 = jax.random.split(key, 6)
    feat_x = jax.random.normal(k1, (B, Vx, C), dtype=jnp.float32)
    feat_y = jax.random.normal(k2, (B, Vy, C), dtype=jnp.float32)
    evals_x = jnp.sort(jnp.abs(jax.random.normal(k3, (B, K), dtype=jnp.float32)), axis=1) + 0.1
    evals_y = jnp.sort(jnp.abs(jax.random.normal(k4, (B, K), dtype=jnp.float32)), axis=1) + 0.1
    evecs_trans_x = jax.random.normal(k5, (B, K, Vx), dtype=jnp.float32) / jnp.sqrt(Vx)
    evecs_trans_y = jax.random.normal(k6, (B, K, Vy), dtype=jnp.float32) / jnp.sqrt(Vy)

    Cxy, Cyx = forward(feat_x, feat_y, evals_x, evals_y, evecs_trans_x, evecs_trans_y)
    Cxy = jax.block_until_ready(Cxy)

    assert Cxy.shape == (B, K, K), Cxy.shape
    assert Cyx is None
    assert bool(jnp.all(jnp.isfinite(Cxy)))

    Cref = _forward_ref(feat_x, feat_y, evals_x, evals_y, evecs_trans_x, evecs_trans_y)
    assert bool(jnp.allclose(Cxy, Cref, rtol=1e-2, atol=1e-3)), (
        "Pallas result deviates from reference:\n"
        f"max abs err = {float(jnp.max(jnp.abs(Cxy - Cref)))}")

    print("KERNEL_OK")
</pallas_src>

<mosaic_0001>
module attributes {stable_mosaic.version = 11 : i64} {
  func.func @_fmnet_kernel(%arg0: i32, %arg1: memref<2x8x128xf32, #tpu.memory_space<vmem>>, %arg2: memref<16x128xf32, #tpu.memory_space<vmem>>, %arg3: memref<128x128xf32, #tpu.memory_space<vmem>>, %arg4: memref<1x1x128xf32, #tpu.memory_space<vmem>>, %arg5: memref<1x1x128xf32, #tpu.memory_space<vmem>>, %arg6: memref<2x8x32xf32, #tpu.memory_space<vmem>>, %arg7: memref<2x32x16xf32, #tpu.memory_space<vmem>>, %arg8: memref<2x8x32xf32, #tpu.memory_space<vmem>>, %arg9: memref<2x32x16xf32, #tpu.memory_space<vmem>>, %arg10: memref<1x1x128xf32, #tpu.memory_space<vmem>>) attributes {dimension_semantics = [#tpu.dimension_semantics<parallel>], iteration_bounds = array<i64: 1>, scalar_prefetch = 0 : i64, scratch_operands = 0 : i64, tpu.core_type = #tpu.core_type<tc>, window_params = [{pipeline_mode = #tpu.pipeline_mode<synchronous>, transform_indices = @transform_0, window_bounds = array<i64: 2, 8, 128>}, {pipeline_mode = #tpu.pipeline_mode<synchronous>, transform_indices = @transform_1, window_bounds = array<i64: 16, 128>}, {pipeline_mode = #tpu.pipeline_mode<synchronous>, transform_indices = @transform_2, window_bounds = array<i64: 128, 128>}, {transform_indices = @transform_3, window_bounds = array<i64: 1, 1, 128>}, {transform_indices = @transform_4, window_bounds = array<i64: 1, 1, 128>}, {transform_indices = @transform_5, window_bounds = array<i64: 2, 8, 32>}, {transform_indices = @transform_6, window_bounds = array<i64: 2, 32, 16>}, {transform_indices = @transform_7, window_bounds = array<i64: 2, 8, 32>}, {transform_indices = @transform_8, window_bounds = array<i64: 2, 32, 16>}, {transform_indices = @transform_9, window_bounds = array<i64: 1, 1, 128>}]} {
    %0 = tpu.iota {dimensions = array<i32: 1>} : vector<1x128xi32>
    %c8_i32 = arith.constant 8 : i32
    %1 = vector.broadcast %c8_i32 : i32 to vector<1x128xi32>
    %2 = arith.remsi %0, %1 : vector<1x128xi32>
    %3 = tpu.iota {dimensions = array<i32: 0>} : vector<16x1xi32>
    %c0 = arith.constant 0 : index
    %c0_0 = arith.constant 0 : index
    %c0_1 = arith.constant 0 : index
    %4 = vector.load %arg4[%c0, %c0_0, %c0_1] : memref<1x1x128xf32, #tpu.memory_space<vmem>>, vector<1x1x128xf32>
    %5 = vector.shape_cast %4 : vector<1x1x128xf32> to vector<1x128xf32>
    %c0_2 = arith.constant 0 : index
    %c0_3 = arith.constant 0 : index
    %c0_4 = arith.constant 0 : index
    %6 = vector.load %arg5[%c0_2, %c0_3, %c0_4] : memref<1x1x128xf32, #tpu.memory_space<vmem>>, vector<1x1x128xf32>
    %7 = vector.shape_cast %6 : vector<1x1x128xf32> to vector<1x128xf32>
    %8 = math.sqrt %5 : vector<1x128xf32>
    %9 = math.sqrt %7 : vector<1x128xf32>
    %10 = arith.mulf %8, %8 : vector<1x128xf32>
    %cst = arith.constant 1.000000e+00 : f32
    %11 = vector.broadcast %cst : f32 to vector<1x128xf32>
    %12 = arith.addf %10, %11 : vector<1x128xf32>
    %cst_5 = arith.constant 1.000000e+00 : f32
    %13 = vector.broadcast %cst_5 : f32 to vector<1x128xf32>
    %14 = arith.divf %13, %12 : vector<1x128xf32>
    %15 = arith.mulf %9, %9 : vector<1x128xf32>
    %cst_6 = arith.constant 1.000000e+00 : f32
    %16 = vector.broadcast %cst_6 : f32 to vector<1x128xf32>
    %17 = arith.addf %15, %16 : vector<1x128xf32>
    %cst_7 = arith.constant 1.000000e+00 : f32
    %18 = vector.broadcast %cst_7 : f32 to vector<1x128xf32>
    %19 = arith.divf %18, %17 : vector<1x128xf32>
    %20 = arith.mulf %9, %19 : vector<1x128xf32>
    %21 = arith.mulf %8, %14 : vector<1x128xf32>
    %22 = arith.subf %20, %21 : vector<1x128xf32>
    %23 = arith.subf %19, %14 : vector<1x128xf32>
    %24 = arith.mulf %22, %22 : vector<1x128xf32>
    %25 = arith.mulf %23, %23 : vector<1x128xf32>
    %26 = arith.addf %24, %25 : vector<1x128xf32>
    %c0_8 = arith.constant 0 : index
    %c0_9 = arith.constant 0 : index
    %c0_10 = arith.constant 0 : index
    %27 = vector.load %arg6[%c0_8, %c0_9, %c0_10] : memref<2x8x32xf32, #tpu.memory_space<vmem>>, vector<1x8x32xf32>
    %28 = vector.shape_cast %27 : vector<1x8x32xf32> to vector<8x32xf32>
    %c0_11 = arith.constant 0 : index
    %c0_12 = arith.constant 0 : index
    %c0_13 = arith.constant 0 : index
    %29 = vector.load %arg7[%c0_11, %c0_12, %c0_13] : memref<2x32x16xf32, #tpu.memory_space<vmem>>, vector<1x32x16xf32>
    %30 = vector.shape_cast %29 : vector<1x32x16xf32> to vector<32x16xf32>
    %cst_14 = arith.constant dense<0.000000e+00> : vector<8x16xf32>
    %31 = tpu.matmul %28, %30, %cst_14 {dimension_numbers = #tpu.dot_dimension_numbers<[1], [0], [0], [1], [0, 0, 1, 1], [], []>} : vector<8x32xf32>, vector<32x16xf32>, vector<8x16xf32> -> vector<8x16xf32>
    %c0_15 = arith.constant 0 : index
    %c0_16 = arith.constant 0 : index
    %c0_17 = arith.constant 0 : index
    %32 = vector.load %arg8[%c0_15, %c0_16, %c0_17] : memref<2x8x32xf32, #tpu.memory_space<vmem>>, vector<1x8x32xf32>
    %33 = vector.shape_cast %32 : vector<1x8x32xf32> to vector<8x32xf32>
    %c0_18 = arith.constant 0 : index
    %c0_19 = arith.constant 0 : index
    %c0_20 = arith.constant 0 : index
    %34 = vector.load %arg9[%c0_18, %c0_19, %c0_20] : memref<2x32x16xf32, #tpu.memory_space<vmem>>, vector<1x32x16xf32>
    %35 = vector.shape_cast %34 : vector<1x32x16xf32> to vector<32x16xf32>
    %cst_21 = arith.constant dense<0.000000e+00> : vector<8x16xf32>
    %36 = tpu.matmul %33, %35, %cst_21 {dimension_numbers = #tpu.dot_dimension_numbers<[1], [0], [0], [1], [0, 0, 1, 1], [], []>} : vector<8x32xf32>, vector<32x16xf32>, vector<8x16xf32> -> vector<8x16xf32>
    %37 = tpu.concatenate %31, %36 in 0 : vector<8x16xf32>, vector<8x16xf32> -> vector<16x16xf32>
    %cst_22 = arith.constant dense<0.000000e+00> : vector<16x8xf32>
    %38 = tpu.matmul %37, %31, %cst_22 {dimension_numbers = #tpu.dot_dimension_numbers<[1], [1], [0], [0], [0, 0, 1, 0], [], []>} : vector<16x16xf32>, vector<8x16xf32>, vector<16x8xf32> -> vector<16x8xf32>
    %c0_23 = arith.constant 0 : index
    %c0_24 = arith.constant 0 : index
    %c0_25 = arith.constant 0 : index
    %39 = vector.load %arg1[%c0_23, %c0_24, %c0_25] : memref<2x8x128xf32, #tpu.memory_space<vmem>>, vector<1x8x128xf32>
    %40 = vector.shape_cast %39 : vector<1x8x128xf32> to vector<8x128xf32>
    %cst_26 = arith.constant dense<0.000000e+00> : vector<16x128xf32>
    %41 = tpu.matmul %38, %40, %cst_26 {dimension_numbers = #tpu.dot_dimension_numbers<[1], [0], [0], [1], [0, 0, 1, 1], [], []>} : vector<16x8xf32>, vector<8x128xf32>, vector<16x128xf32> -> vector<16x128xf32>
    %c1 = arith.constant 1 : index
    %c0_27 = arith.constant 0 : index
    %c0_28 = arith.constant 0 : index
    %42 = vector.load %arg6[%c1, %c0_27, %c0_28] : memref<2x8x32xf32, #tpu.memory_space<vmem>>, vector<1x8x32xf32>
    %43 = vector.shape_cast %42 : vector<1x8x32xf32> to vector<8x32xf32>
    %c1_29 = arith.constant 1 : index
    %c0_30 = arith.constant 0 : index
    %c0_31 = arith.constant 0 : index
    %44 = vector.load %arg7[%c1_29, %c0_30, %c0_31] : memref<2x32x16xf32, #tpu.memory_space<vmem>>, vector<1x32x16xf32>
    %45 = vector.shape_cast %44 : vector<1x32x16xf32> to vector<32x16xf32>
    %cst_32 = arith.constant dense<0.000000e+00> : vector<8x16xf32>
    %46 = tpu.matmul %43, %45, %cst_32 {dimension_numbers = #tpu.dot_dimension_numbers<[1], [0], [0], [1], [0, 0, 1, 1], [], []>} : vector<8x32xf32>, vector<32x16xf32>, vector<8x16xf32> -> vector<8x16xf32>
    %c1_33 = arith.constant 1 : index
    %c0_34 = arith.constant 0 : index
    %c0_35 = arith.constant 0 : index
    %47 = vector.load %arg8[%c1_33, %c0_34, %c0_35] : memref<2x8x32xf32, #tpu.memory_space<vmem>>, vector<1x8x32xf32>
    %48 = vector.shape_cast %47 : vector<1x8x32xf32> to vector<8x32xf32>
    %c1_36 = arith.constant 1 : index
    %c0_37 = arith.constant 0 : index
    %c0_38 = arith.constant 0 : index
    %49 = vector.load %arg9[%c1_36, %c0_37, %c0_38] : memref<2x32x16xf32, #tpu.memory_space<vmem>>, vector<1x32x16xf32>
    %50 = vector.shape_cast %49 : vector<1x32x16xf32> to vector<32x16xf32>
    %cst_39 = arith.constant dense<0.000000e+00> : vector<8x16xf32>
    %51 = tpu.matmul %48, %50, %cst_39 {dimension_numbers = #tpu.dot_dimension_numbers<[1], [0], [0], [1], [0, 0, 1, 1], [], []>} : vector<8x32xf32>, vector<32x16xf32>, vector<8x16xf32> -> vector<8x16xf32>
    %52 = tpu.concatenate %46, %51 in 0 : vector<8x16xf32>, vector<8x16xf32> -> vector<16x16xf32>
    %cst_40 = arith.constant dense<0.000000e+00> : vector<16x8xf32>
    %53 = tpu.matmul %52, %46, %cst_40 {dimension_numbers = #tpu.dot_dimension_numbers<[1], [1], [0], [0], [0, 0, 1, 0], [], []>} : vector<16x16xf32>, vector<8x16xf32>, vector<16x8xf32> -> vector<16x8xf32>
    %c1_41 = arith.constant 1 : index
    %c0_42 = arith.constant 0 : index
    %c0_43 = arith.constant 0 : index
    %54 = vector.load %arg1[%c1_41, %c0_42, %c0_43] : memref<2x8x128xf32, #tpu.memory_space<vmem>>, vector<1x8x128xf32>
    %55 = vector.shape_cast %54 : vector<1x8x128xf32> to vector<8x128xf32>
    %cst_44 = arith.constant dense<0.000000e+00> : vector<16x128xf32>
    %56 = tpu.matmul %53, %55, %cst_44 {dimension_numbers = #tpu.dot_dimension_numbers<[1], [0], [0], [1], [0, 0, 1, 1], [], []>} : vector<16x8xf32>, vector<8x128xf32>, vector<16x128xf32> -> vector<16x128xf32>
    %57 = arith.addf %41, %56 : vector<16x128xf32>
    %c0_45 = arith.constant 0 : index
    %c0_46 = arith.constant 0 : index
    %58 = vector.load %arg2[%c0_45, %c0_46] : memref<16x128xf32, #tpu.memory_space<vmem>>, vector<16x128xf32>
    %59 = arith.mulf %57, %58 : vector<16x128xf32>
    %cst_47 = arith.constant dense<0.000000e+00> : vector<128xf32>
    %60 = vector.multi_reduction <add>, %59, %cst_47 [0] : vector<16x128xf32> to vector<128xf32>
    %61 = vector.shape_cast %60 : vector<128xf32> to vector<1x128xf32>
    %62 = vector.broadcast %3 : vector<16x1xi32> to vector<16x128xi32>
    %63 = vector.broadcast %2 : vector<1x128xi32> to vector<16x128xi32>
    %64 = arith.cmpi eq, %62, %63 : vector<16x128xi32>
    %cst_48 = arith.constant 1.000000e+02 : f32
    %65 = vector.broadcast %cst_48 : f32 to vector<1x128xf32>
    %66 = arith.mulf %65, %26 : vector<1x128xf32>
    %cst_49 = arith.constant 0.000000e+00 : f32
    %67 = vector.shape_cast %66 : vector<1x128xf32> to vector<1x128xf32>
    %68 = vector.broadcast %67 : vector<1x128xf32> to vector<16x128xf32>
    %69 = vector.broadcast %cst_49 : f32 to vector<16x128xf32>
    %70 = arith.select %64, %68, %69 : vector<16x128xi1>, vector<16x128xf32>
    %c8_i32_50 = arith.constant 8 : i32
    %71 = vector.broadcast %c8_i32_50 : i32 to vector<16x1xi32>
    %72 = arith.cmpi eq, %3, %71 : vector<16x1xi32>
    %73 = arith.addf %57, %70 : vector<16x128xf32>
    %74 = vector.shape_cast %72 : vector<16x1xi1> to vector<16x1xi1>
    %75 = vector.broadcast %74 : vector<16x1xi1> to vector<16x128xi1>
    %76 = vector.shape_cast %61 : vector<1x128xf32> to vector<1x128xf32>
    %77 = vector.broadcast %76 : vector<1x128xf32> to vector<16x128xf32>
    %78 = arith.select %75, %77, %73 : vector<16x128xi1>, vector<16x128xf32>
    %c0_i32 = arith.constant 0 : i32
    %79 = vector.broadcast %c0_i32 : i32 to vector<1x128xi32>
    %80 = arith.cmpi eq, %2, %79 : vector<1x128xi32>
    %cst_51 = arith.constant 0.000000e+00 : f32
    %81 = vector.shape_cast %80 : vector<1x128xi1> to vector<1x128xi1>
    %82 = vector.broadcast %81 : vector<1x128xi1> to vector<16x128xi1>
    %83 = vector.broadcast %cst_51 : f32 to vector<16x128xf32>
    %84 = arith.select %82, %78, %83 : vector<16x128xi1>, vector<16x128xf32>
    %c0_52 = arith.constant 0 : index
    %c0_53 = arith.constant 0 : index
    %85 = vector.load %arg3[%c0_52, %c0_53] : memref<128x128xf32, #tpu.memory_space<vmem>>, vector<128x128xf32>
    %cst_54 = arith.constant dense<0.000000e+00> : vector<16x128xf32>
    %86 = tpu.matmul %84, %85, %cst_54 {dimension_numbers = #tpu.dot_dimension_numbers<[1], [0], [0], [1], [0, 0, 1, 1], [], []>} : vector<16x128xf32>, vector<128x128xf32>, vector<16x128xf32> -> vector<16x128xf32>
    %87 = vector.broadcast %c0_i32 : i32 to vector<16x1xi32>
    %88 = arith.cmpi eq, %3, %87 : vector<16x1xi32>
    %cst_55 = arith.constant 0.000000e+00 : f32
    %89 = vector.shape_cast %88 : vector<16x1xi1> to vector<16x1xi1>
    %90 = vector.broadcast %89 : vector<16x1xi1> to vector<16x128xi1>
    %91 = vector.broadcast %cst_55 : f32 to vector<16x128xf32>
    %92 = arith.select %90, %86, %91 : vector<16x128xi1>, vector<16x128xf32>
    %cst_56 = arith.constant dense<0.000000e+00> : vector<128xf32>
    %93 = vector.multi_reduction <add>, %92, %cst_56 [0] : vector<16x128xf32> to vector<128xf32>
    %94 = vector.shape_cast %93 : vector<128xf32> to vector<1x128xf32>
    %cst_57 = arith.constant 0.000000e+00 : f32
    %95 = vector.shape_cast %88 : vector<16x1xi1> to vector<16x1xi1>
    %96 = vector.broadcast %95 : vector<16x1xi1> to vector<16x128xi1>
    %97 = vector.broadcast %cst_57 : f32 to vector<16x128xf32>
    %98 = arith.select %96, %78, %97 : vector<16x128xi1>, vector<16x128xf32>
    %cst_58 = arith.constant dense<0.000000e+00> : vector<128xf32>
    %99 = vector.multi_reduction <add>, %98, %cst_58 [0] : vector<16x128xf32> to vector<128xf32>
    %100 = vector.shape_cast %99 : vector<128xf32> to vector<1x128xf32>
    %101 = math.absf %94 : vector<1x128xf32>
    %cst_59 = arith.constant 1.000000e-30 : f32
    %102 = vector.broadcast %cst_59 : f32 to vector<1x128xf32>
    %103 = arith.cmpf olt, %101, %102 : vector<1x128xf32>
    %cst_60 = arith.constant 1.000000e-30 : f32
    %104 = vector.broadcast %cst_60 : f32 to vector<1x128xf32>
    %105 = arith.select %103, %104, %94 : vector<1x128xi1>, vector<1x128xf32>
    %106 = tpu.reciprocal %105 {approx = true} : vector<1x128xf32> -> vector<1x128xf32>
    %107 = arith.mulf %105, %106 : vector<1x128xf32>
    %cst_61 = arith.constant 2.000000e+00 : f32
    %108 = vector.broadcast %cst_61 : f32 to vector<1x128xf32>
    %109 = arith.subf %108, %107 : vector<1x128xf32>
    %110 = arith.mulf %106, %109 : vector<1x128xf32>
    %111 = vector.broadcast %110 : vector<1x128xf32> to vector<16x128xf32>
    %112 = arith.mulf %86, %111 : vector<16x128xf32>
    %113 = vector.broadcast %100 : vector<1x128xf32> to vector<16x128xf32>
    %114 = arith.mulf %113, %112 : vector<16x128xf32>
    %115 = arith.subf %78, %114 : vector<16x128xf32>
    %116 = vector.shape_cast %80 : vector<1x128xi1> to vector<1x128xi1>
    %117 = vector.broadcast %116 : vector<1x128xi1> to vector<16x128xi1>
    %118 = arith.select %117, %112, %115 : vector<16x128xi1>, vector<16x128xf32>
    %c1_i32 = arith.constant 1 : i32
    %119 = vector.broadcast %c1_i32 : i32 to vector<1x128xi32>
    %120 = arith.cmpi eq, %2, %119 : vector<1x128xi32>
    %cst_62 = arith.constant 0.000000e+00 : f32
    %121 = vector.shape_cast %120 : vector<1x128xi1> to vector<1x128xi1>
    %122 = vector.broadcast %121 : vector<1x128xi1> to vector<16x128xi1>
    %123 = vector.broadcast %cst_62 : f32 to vector<16x128xf32>
    %124 = arith.select %122, %118, %123 : vector<16x128xi1>, vector<16x128xf32>
    %c0_63 = arith.constant 0 : index
    %c0_64 = arith.constant 0 : index
    %125 = vector.load %arg3[%c0_63, %c0_64] : memref<128x128xf32, #tpu.memory_space<vmem>>, vector<128x128xf32>
    %cst_65 = arith.constant dense<0.000000e+00> : vector<16x128xf32>
    %126 = tpu.matmul %124, %125, %cst_65 {dimension_numbers = #tpu.dot_dimension_numbers<[1], [0], [0], [1], [0, 0, 1, 1], [], []>} : vector<16x128xf32>, vector<128x128xf32>, vector<16x128xf32> -> vector<16x128xf32>
    %127 = vector.broadcast %c1_i32 : i32 to vector<16x1xi32>
    %128 = arith.cmpi eq, %3, %127 : vector<16x1xi32>
    %cst_66 = arith.constant 0.000000e+00 : f32
    %129 = vector.shape_cast %128 : vector<16x1xi1> to vector<16x1xi1>
    %130 = vector.broadcast %129 : vector<16x1xi1> to vector<16x128xi1>
    %131 = vector.broadcast %cst_66 : f32 to vector<16x128xf32>
    %132 = arith.select %130, %126, %131 : vector<16x128xi1>, vector<16x128xf32>
    %cst_67 = arith.constant dense<0.000000e+00> : vector<128xf32>
    %133 = vector.multi_reduction <add>, %132, %cst_67 [0] : vector<16x128xf32> to vector<128xf32>
    %134 = vector.shape_cast %133 : vector<128xf32> to vector<1x128xf32>
    %cst_68 = arith.constant 0.000000e+00 : f32
    %135 = vector.shape_cast %128 : vector<16x1xi1> to vector<16x1xi1>
    %136 = vector.broadcast %135 : vector<16x1xi1> to vector<16x128xi1>
    %137 = vector.broadcast %cst_68 : f32 to vector<16x128xf32>
    %138 = arith.select %136, %118, %137 : vector<16x128xi1>, vector<16x128xf32>
    %cst_69 = arith.constant dense<0.000000e+00> : vector<128xf32>
    %139 = vector.multi_reduction <add>, %138, %cst_69 [0] : vector<16x128xf32> to vector<128xf32>
    %140 = vector.shape_cast %139 : vector<128xf32> to vector<1x128xf32>
    %141 = math.absf %134 : vector<1x128xf32>
    %cst_70 = arith.constant 1.000000e-30 : f32
    %142 = vector.broadcast %cst_70 : f32 to vector<1x128xf32>
    %143 = arith.cmpf olt, %141, %142 : vector<1x128xf32>
    %cst_71 = arith.constant 1.000000e-30 : f32
    %144 = vector.broadcast %cst_71 : f32 to vector<1x128xf32>
    %145 = arith.select %143, %144, %134 : vector<1x128xi1>, vector<1x128xf32>
    %146 = tpu.reciprocal %145 {approx = true} : vector<1x128xf32> -> vector<1x128xf32>
    %147 = arith.mulf %145, %146 : vector<1x128xf32>
    %cst_72 = arith.constant 2.000000e+00 : f32
    %148 = vector.broadcast %cst_72 : f32 to vector<1x128xf32>
    %149 = arith.subf %148, %147 : vector<1x128xf32>
    %150 = arith.mulf %146, %149 : vector<1x128xf32>
    %151 = vector.broadcast %150 : vector<1x128xf32> to vector<16x128xf32>
    %152 = arith.mulf %126, %151 : vector<16x128xf32>
    %153 = vector.broadcast %140 : vector<1x128xf32> to vector<16x128xf32>
    %154 = arith.mulf %153, %152 : vector<16x128xf32>
    %155 = arith.subf %118, %154 : vector<16x128xf32>
    %156 = vector.shape_cast %120 : vector<1x128xi1> to vector<1x128xi1>
    %157 = vector.broadcast %156 : vector<1x128xi1> to vector<16x128xi1>
    %158 = arith.select %157, %152, %155 : vector<16x128xi1>, vector<16x128xf32>
    %c2_i32 = arith.constant 2 : i32
    %159 = vector.broadcast %c2_i32 : i32 to vector<1x128xi32>
    %160 = arith.cmpi eq, %2, %159 : vector<1x128xi32>
    %cst_73 = arith.constant 0.000000e+00 : f32
    %161 = vector.shape_cast %160 : vector<1x128xi1> to vector<1x128xi1>
    %162 = vector.broadcast %161 : vector<1x128xi1> to vector<16x128xi1>
    %163 = vector.broadcast %cst_73 : f32 to vector<16x128xf32>
    %164 = arith.select %162, %158, %163 : vector<16x128xi1>, vector<16x128xf32>
    %c0_74 = arith.constant 0 : index
    %c0_75 = arith.constant 0 : index
    %165 = vector.load %arg3[%c0_74, %c0_75] : memref<128x128xf32, #tpu.memory_space<vmem>>, vector<128x128xf32>
    %cst_76 = arith.constant dense<0.000000e+00> : vector<16x128xf32>
    %166 = tpu.matmul %164, %165, %cst_76 {dimension_numbers = #tpu.dot_dimension_numbers<[1], [0], [0], [1], [0, 0, 1, 1], [], []>} : vector<16x128xf32>, vector<128x128xf32>, vector<16x128xf32> -> vector<16x128xf32>
    %167 = vector.broadcast %c2_i32 : i32 to vector<16x1xi32>
    %168 = arith.cmpi eq, %3, %167 : vector<16x1xi32>
    %cst_77 = arith.constant 0.000000e+00 : f32
    %169 = vector.shape_cast %168 : vector<16x1xi1> to vector<16x1xi1>
    %170 = vector.broadcast %169 : vector<16x1xi1> to vector<16x128xi1>
    %171 = vector.broadcast %cst_77 : f32 to vector<16x128xf32>
    %172 = arith.select %170, %166, %171 : vector<16x128xi1>, vector<16x128xf32>
    %cst_78 = arith.constant dense<0.000000e+00> : vector<128xf32>
    %173 = vector.multi_reduction <add>, %172, %cst_78 [0] : vector<16x128xf32> to vector<128xf32>
    %174 = vector.shape_cast %173 : vector<128xf32> to vector<1x128xf32>
    %cst_79 = arith.constant 0.000000e+00 : f32
    %175 = vector.shape_cast %168 : vector<16x1xi1> to vector<16x1xi1>
    %176 = vector.broadcast %175 : vector<16x1xi1> to vector<16x128xi1>
    %177 = vector.broadcast %cst_79 : f32 to vector<16x128xf32>
    %178 = arith.select %176, %158, %177 : vector<16x128xi1>, vector<16x128xf32>
    %cst_80 = arith.constant dense<0.000000e+00> : vector<128xf32>
    %179 = vector.multi_reduction <add>, %178, %cst_80 [0] : vector<16x128xf32> to vector<128xf32>
    %180 = vector.shape_cast %179 : vector<128xf32> to vector<1x128xf32>
    %181 = math.absf %174 : vector<1x128xf32>
    %cst_81 = arith.constant 1.000000e-30 : f32
    %182 = vector.broadcast %cst_81 : f32 to vector<1x128xf32>
    %183 = arith.cmpf olt, %181, %182 : vector<1x128xf32>
    %cst_82 = arith.constant 1.000000e-30 : f32
    %184 = vector.broadcast %cst_82 : f32 to vector<1x128xf32>
    %185 = arith.select %183, %184, %174 : vector<1x128xi1>, vector<1x128xf32>
    %186 = tpu.reciprocal %185 {approx = true} : vector<1x128xf32> -> vector<1x128xf32>
    %187 = arith.mulf %185, %186 : vector<1x128xf32>
    %cst_83 = arith.constant 2.000000e+00 : f32
    %188 = vector.broadcast %cst_83 : f32 to vector<1x128xf32>
    %189 = arith.subf %188, %187 : vector<1x128xf32>
    %190 = arith.mulf %186, %189 : vector<1x128xf32>
    %191 = vector.broadcast %190 : vector<1x128xf32> to vector<16x128xf32>
    %192 = arith.mulf %166, %191 : vector<16x128xf32>
    %193 = vector.broadcast %180 : vector<1x128xf32> to vector<16x128xf32>
    %194 = arith.mulf %193, %192 : vector<16x128xf32>
    %195 = arith.subf %158, %194 : vector<16x128xf32>
    %196 = vector.shape_cast %160 : vector<1x128xi1> to vector<1x128xi1>
    %197 = vector.broadcast %196 : vector<1x128xi1> to vector<16x128xi1>
    %198 = arith.select %197, %192, %195 : vector<16x128xi1>, vector<16x128xf32>
    %c3_i32 = arith.constant 3 : i32
    %199 = vector.broadcast %c3_i32 : i32 to vector<1x128xi32>
    %200 = arith.cmpi eq, %2, %199 : vector<1x128xi32>
    %cst_84 = arith.constant 0.000000e+00 : f32
    %201 = vector.shape_cast %200 : vector<1x128xi1> to vector<1x128xi1>
    %202 = vector.broadcast %201 : vector<1x128xi1> to vector<16x128xi1>
    %203 = vector.broadcast %cst_84 : f32 to vector<16x128xf32>
    %204 = arith.select %202, %198, %203 : vector<16x128xi1>, vector<16x128xf32>
    %c0_85 = arith.constant 0 : index
    %c0_86 = arith.constant 0 : index
    %205 = vector.load %arg3[%c0_85, %c0_86] : memref<128x128xf32, #tpu.memory_space<vmem>>, vector<128x128xf32>
    %cst_87 = arith.constant dense<0.000000e+00> : vector<16x128xf32>
    %206 = tpu.matmul %204, %205, %cst_87 {dimension_numbers = #tpu.dot_dimension_numbers<[1], [0], [0], [1], [0, 0, 1, 1], [], []>} : vector<16x128xf32>, vector<128x128xf32>, vector<16x128xf32> -> vector<16x128xf32>
    %207 = vector.broadcast %c3_i32 : i32 to vector<16x1xi32>
    %208 = arith.cmpi eq, %3, %207 : vector<16x1xi32>
    %cst_88 = arith.constant 0.000000e+00 : f32
    %209 = vector.shape_cast %208 : vector<16x1xi1> to vector<16x1xi1>
    %210 = vector.broadcast %209 : vector<16x1xi1> to vector<16x128xi1>
    %211 = vector.broadcast %cst_88 : f32 to vector<16x128xf32>
    %212 = arith.select %210, %206, %211 : vector<16x128xi1>, vector<16x128xf32>
    %cst_89 = arith.constant dense<0.000000e+00> : vector<128xf32>
    %213 = vector.multi_reduction <add>, %212, %cst_89 [0] : vector<16x128xf32> to vector<128xf32>
    %214 = vector.shape_cast %213 : vector<128xf32> to vector<1x128xf32>
    %cst_90 = arith.constant 0.000000e+00 : f32
    %215 = vector.shape_cast %208 : vector<16x1xi1> to vector<16x1xi1>
    %216 = vector.broadcast %215 : vector<16x1xi1> to vector<16x128xi1>
    %217 = vector.broadcast %cst_90 : f32 to vector<16x128xf32>
    %218 = arith.select %216, %198, %217 : vector<16x128xi1>, vector<16x128xf32>
    %cst_91 = arith.constant dense<0.000000e+00> : vector<128xf32>
    %219 = vector.multi_reduction <add>, %218, %cst_91 [0] : vector<16x128xf32> to vector<128xf32>
    %220 = vector.shape_cast %219 : vector<128xf32> to vector<1x128xf32>
    %221 = math.absf %214 : vector<1x128xf32>
    %cst_92 = arith.constant 1.000000e-30 : f32
    %222 = vector.broadcast %cst_92 : f32 to vector<1x128xf32>
    %223 = arith.cmpf olt, %221, %222 : vector<1x128xf32>
    %cst_93 = arith.constant 1.000000e-30 : f32
    %224 = vector.broadcast %cst_93 : f32 to vector<1x128xf32>
    %225 = arith.select %223, %224, %214 : vector<1x128xi1>, vector<1x128xf32>
    %226 = tpu.reciprocal %225 {approx = true} : vector<1x128xf32> -> vector<1x128xf32>
    %227 = arith.mulf %225, %226 : vector<1x128xf32>
    %cst_94 = arith.constant 2.000000e+00 : f32
    %228 = vector.broadcast %cst_94 : f32 to vector<1x128xf32>
    %229 = arith.subf %228, %227 : vector<1x128xf32>
    %230 = arith.mulf %226, %229 : vector<1x128xf32>
    %231 = vector.broadcast %230 : vector<1x128xf32> to vector<16x128xf32>
    %232 = arith.mulf %206, %231 : vector<16x128xf32>
    %233 = vector.broadcast %220 : vector<1x128xf32> to vector<16x128xf32>
    %234 = arith.mulf %233, %232 : vector<16x128xf32>
    %235 = arith.subf %198, %234 : vector<16x128xf32>
    %236 = vector.shape_cast %200 : vector<1x128xi1> to vector<1x128xi1>
    %237 = vector.broadcast %236 : vector<1x128xi1> to vector<16x128xi1>
    %238 = arith.select %237, %232, %235 : vector<16x128xi1>, vector<16x128xf32>
    %c4_i32 = arith.constant 4 : i32
    %239 = vector.broadcast %c4_i32 : i32 to vector<1x128xi32>
    %240 = arith.cmpi eq, %2, %239 : vector<1x128xi32>
    %cst_95 = arith.constant 0.000000e+00 : f32
    %241 = vector.shape_cast %240 : vector<1x128xi1> to vector<1x128xi1>
    %242 = vector.broadcast %241 : vector<1x128xi1> to vector<16x128xi1>
    %243 = vector.broadcast %cst_95 : f32 to vector<16x128xf32>
    %244 = arith.select %242, %238, %243 : vector<16x128xi1>, vector<16x128xf32>
    %c0_96 = arith.constant 0 : index
    %c0_97 = arith.constant 0 : index
    %245 = vector.load %arg3[%c0_96, %c0_97] : memref<128x128xf32, #tpu.memory_space<vmem>>, vector<128x128xf32>
    %cst_98 = arith.constant dense<0.000000e+00> : vector<16x128xf32>
    %246 = tpu.matmul %244, %245, %cst_98 {dimension_numbers = #tpu.dot_dimension_numbers<[1], [0], [0], [1], [0, 0, 1, 1], [], []>} : vector<16x128xf32>, vector<128x128xf32>, vector<16x128xf32> -> vector<16x128xf32>
    %247 = vector.broadcast %c4_i32 : i32 to vector<16x1xi32>
    %248 = arith.cmpi eq, %3, %247 : vector<16x1xi32>
    %cst_99 = arith.constant 0.000000e+00 : f32
    %249 = vector.shape_cast %248 : vector<16x1xi1> to vector<16x1xi1>
    %250 = vector.broadcast %249 : vector<16x1xi1> to vector<16x128xi1>
    %251 = vector.broadcast %cst_99 : f32 to vector<16x128xf32>
    %252 = arith.select %250, %246, %251 : vector<16x128xi1>, vector<16x128xf32>
    %cst_100 = arith.constant dense<0.000000e+00> : vector<128xf32>
    %253 = vector.multi_reduction <add>, %252, %cst_100 [0] : vector<16x128xf32> to vector<128xf32>
    %254 = vector.shape_cast %253 : vector<128xf32> to vector<1x128xf32>
    %cst_101 = arith.constant 0.000000e+00 : f32
    %255 = vector.shape_cast %248 : vector<16x1xi1> to vector<16x1xi1>
    %256 = vector.broadcast %255 : vector<16x1xi1> to vector<16x128xi1>
    %257 = vector.broadcast %cst_101 : f32 to vector<16x128xf32>
    %258 = arith.select %256, %238, %257 : vector<16x128xi1>, vector<16x128xf32>
    %cst_102 = arith.constant dense<0.000000e+00> : vector<128xf32>
    %259 = vector.multi_reduction <add>, %258, %cst_102 [0] : vector<16x128xf32> to vector<128xf32>
    %260 = vector.shape_cast %259 : vector<128xf32> to vector<1x128xf32>
    %261 = math.absf %254 : vector<1x128xf32>
    %cst_103 = arith.constant 1.000000e-30 : f32
    %262 = vector.broadcast %cst_103 : f32 to vector<1x128xf32>
    %263 = arith.cmpf olt, %261, %262 : vector<1x128xf32>
    %cst_104 = arith.constant 1.000000e-30 : f32
    %264 = vector.broadcast %cst_104 : f32 to vector<1x128xf32>
    %265 = arith.select %263, %264, %254 : vector<1x128xi1>, vector<1x128xf32>
    %266 = tpu.reciprocal %265 {approx = true} : vector<1x128xf32> -> vector<1x128xf32>
    %267 = arith.mulf %265, %266 : vector<1x128xf32>
    %cst_105 = arith.constant 2.000000e+00 : f32
    %268 = vector.broadcast %cst_105 : f32 to vector<1x128xf32>
    %269 = arith.subf %268, %267 : vector<1x128xf32>
    %270 = arith.mulf %266, %269 : vector<1x128xf32>
    %271 = vector.broadcast %270 : vector<1x128xf32> to vector<16x128xf32>
    %272 = arith.mulf %246, %271 : vector<16x128xf32>
    %273 = vector.broadcast %260 : vector<1x128xf32> to vector<16x128xf32>
    %274 = arith.mulf %273, %272 : vector<16x128xf32>
    %275 = arith.subf %238, %274 : vector<16x128xf32>
    %276 = vector.shape_cast %240 : vector<1x128xi1> to vector<1x128xi1>
    %277 = vector.broadcast %276 : vector<1x128xi1> to vector<16x128xi1>
    %278 = arith.select %277, %272, %275 : vector<16x128xi1>, vector<16x128xf32>
    %c5_i32 = arith.constant 5 : i32
    %279 = vector.broadcast %c5_i32 : i32 to vector<1x128xi32>
    %280 = arith.cmpi eq, %2, %279 : vector<1x128xi32>
    %cst_106 = arith.constant 0.000000e+00 : f32
    %281 = vector.shape_cast %280 : vector<1x128xi1> to vector<1x128xi1>
    %282 = vector.broadcast %281 : vector<1x128xi1> to vector<16x128xi1>
    %283 = vector.broadcast %cst_106 : f32 to vector<16x128xf32>
    %284 = arith.select %282, %278, %283 : vector<16x128xi1>, vector<16x128xf32>
    %c0_107 = arith.constant 0 : index
    %c0_108 = arith.constant 0 : index
    %285 = vector.load %arg3[%c0_107, %c0_108] : memref<128x128xf32, #tpu.memory_space<vmem>>, vector<128x128xf32>
    %cst_109 = arith.constant dense<0.000000e+00> : vector<16x128xf32>
    %286 = tpu.matmul %284, %285, %cst_109 {dimension_numbers = #tpu.dot_dimension_numbers<[1], [0], [0], [1], [0, 0, 1, 1], [], []>} : vector<16x128xf32>, vector<128x128xf32>, vector<16x128xf32> -> vector<16x128xf32>
    %287 = vector.broadcast %c5_i32 : i32 to vector<16x1xi32>
    %288 = arith.cmpi eq, %3, %287 : vector<16x1xi32>
    %cst_110 = arith.constant 0.000000e+00 : f32
    %289 = vector.shape_cast %288 : vector<16x1xi1> to vector<16x1xi1>
    %290 = vector.broadcast %289 : vector<16x1xi1> to vector<16x128xi1>
    %291 = vector.broadcast %cst_110 : f32 to vector<16x128xf32>
    %292 = arith.select %290, %286, %291 : vector<16x128xi1>, vector<16x128xf32>
    %cst_111 = arith.constant dense<0.000000e+00> : vector<128xf32>
    %293 = vector.multi_reduction <add>, %292, %cst_111 [0] : vector<16x128xf32> to vector<128xf32>
    %294 = vector.shape_cast %293 : vector<128xf32> to vector<1x128xf32>
    %cst_112 = arith.constant 0.000000e+00 : f32
    %295 = vector.shape_cast %288 : vector<16x1xi1> to vector<16x1xi1>
    %296 = vector.broadcast %295 : vector<16x1xi1> to vector<16x128xi1>
    %297 = vector.broadcast %cst_112 : f32 to vector<16x128xf32>
    %298 = arith.select %296, %278, %297 : vector<16x128xi1>, vector<16x128xf32>
    %cst_113 = arith.constant dense<0.000000e+00> : vector<128xf32>
    %299 = vector.multi_reduction <add>, %298, %cst_113 [0] : vector<16x128xf32> to vector<128xf32>
    %300 = vector.shape_cast %299 : vector<128xf32> to vector<1x128xf32>
    %301 = math.absf %294 : vector<1x128xf32>
    %cst_114 = arith.constant 1.000000e-30 : f32
    %302 = vector.broadcast %cst_114 : f32 to vector<1x128xf32>
    %303 = arith.cmpf olt, %301, %302 : vector<1x128xf32>
    %cst_115 = arith.constant 1.000000e-30 : f32
    %304 = vector.broadcast %cst_115 : f32 to vector<1x128xf32>
    %305 = arith.select %303, %304, %294 : vector<1x128xi1>, vector<1x128xf32>
    %306 = tpu.reciprocal %305 {approx = true} : vector<1x128xf32> -> vector<1x128xf32>
    %307 = arith.mulf %305, %306 : vector<1x128xf32>
    %cst_116 = arith.constant 2.000000e+00 : f32
    %308 = vector.broadcast %cst_116 : f32 to vector<1x128xf32>
    %309 = arith.subf %308, %307 : vector<1x128xf32>
    %310 = arith.mulf %306, %309 : vector<1x128xf32>
    %311 = vector.broadcast %310 : vector<1x128xf32> to vector<16x128xf32>
    %312 = arith.mulf %286, %311 : vector<16x128xf32>
    %313 = vector.broadcast %300 : vector<1x128xf32> to vector<16x128xf32>
    %314 = arith.mulf %313, %312 : vector<16x128xf32>
    %315 = arith.subf %278, %314 : vector<16x128xf32>
    %316 = vector.shape_cast %280 : vector<1x128xi1> to vector<1x128xi1>
    %317 = vector.broadcast %316 : vector<1x128xi1> to vector<16x128xi1>
    %318 = arith.select %317, %312, %315 : vector<16x128xi1>, vector<16x128xf32>
    %c6_i32 = arith.constant 6 : i32
    %319 = vector.broadcast %c6_i32 : i32 to vector<1x128xi32>
    %320 = arith.cmpi eq, %2, %319 : vector<1x128xi32>
    %cst_117 = arith.constant 0.000000e+00 : f32
    %321 = vector.shape_cast %320 : vector<1x128xi1> to vector<1x128xi1>
    %322 = vector.broadcast %321 : vector<1x128xi1> to vector<16x128xi1>
    %323 = vector.broadcast %cst_117 : f32 to vector<16x128xf32>
    %324 = arith.select %322, %318, %323 : vector<16x128xi1>, vector<16x128xf32>
    %c0_118 = arith.constant 0 : index
    %c0_119 = arith.constant 0 : index
    %325 = vector.load %arg3[%c0_118, %c0_119] : memref<128x128xf32, #tpu.memory_space<vmem>>, vector<128x128xf32>
    %cst_120 = arith.constant dense<0.000000e+00> : vector<16x128xf32>
    %326 = tpu.matmul %324, %325, %cst_120 {dimension_numbers = #tpu.dot_dimension_numbers<[1], [0], [0], [1], [0, 0, 1, 1], [], []>} : vector<16x128xf32>, vector<128x128xf32>, vector<16x128xf32> -> vector<16x128xf32>
    %327 = vector.broadcast %c6_i32 : i32 to vector<16x1xi32>
    %328 = arith.cmpi eq, %3, %327 : vector<16x1xi32>
    %cst_121 = arith.constant 0.000000e+00 : f32
    %329 = vector.shape_cast %328 : vector<16x1xi1> to vector<16x1xi1>
    %330 = vector.broadcast %329 : vector<16x1xi1> to vector<16x128xi1>
    %331 = vector.broadcast %cst_121 : f32 to vector<16x128xf32>
    %332 = arith.select %330, %326, %331 : vector<16x128xi1>, vector<16x128xf32>
    %cst_122 = arith.constant dense<0.000000e+00> : vector<128xf32>
    %333 = vector.multi_reduction <add>, %332, %cst_122 [0] : vector<16x128xf32> to vector<128xf32>
    %334 = vector.shape_cast %333 : vector<128xf32> to vector<1x128xf32>
    %cst_123 = arith.constant 0.000000e+00 : f32
    %335 = vector.shape_cast %328 : vector<16x1xi1> to vector<16x1xi1>
    %336 = vector.broadcast %335 : vector<16x1xi1> to vector<16x128xi1>
    %337 = vector.broadcast %cst_123 : f32 to vector<16x128xf32>
    %338 = arith.select %336, %318, %337 : vector<16x128xi1>, vector<16x128xf32>
    %cst_124 = arith.constant dense<0.000000e+00> : vector<128xf32>
    %339 = vector.multi_reduction <add>, %338, %cst_124 [0] : vector<16x128xf32> to vector<128xf32>
    %340 = vector.shape_cast %339 : vector<128xf32> to vector<1x128xf32>
    %341 = math.absf %334 : vector<1x128xf32>
    %cst_125 = arith.constant 1.000000e-30 : f32
    %342 = vector.broadcast %cst_125 : f32 to vector<1x128xf32>
    %343 = arith.cmpf olt, %341, %342 : vector<1x128xf32>
    %cst_126 = arith.constant 1.000000e-30 : f32
    %344 = vector.broadcast %cst_126 : f32 to vector<1x128xf32>
    %345 = arith.select %343, %344, %334 : vector<1x128xi1>, vector<1x128xf32>
    %346 = tpu.reciprocal %345 {approx = true} : vector<1x128xf32> -> vector<1x128xf32>
    %347 = arith.mulf %345, %346 : vector<1x128xf32>
    %cst_127 = arith.constant 2.000000e+00 : f32
    %348 = vector.broadcast %cst_127 : f32 to vector<1x128xf32>
    %349 = arith.subf %348, %347 : vector<1x128xf32>
    %350 = arith.mulf %346, %349 : vector<1x128xf32>
    %351 = vector.broadcast %350 : vector<1x128xf32> to vector<16x128xf32>
    %352 = arith.mulf %326, %351 : vector<16x128xf32>
    %353 = vector.broadcast %340 : vector<1x128xf32> to vector<16x128xf32>
    %354 = arith.mulf %353, %352 : vector<16x128xf32>
    %355 = arith.subf %318, %354 : vector<16x128xf32>
    %356 = vector.shape_cast %320 : vector<1x128xi1> to vector<1x128xi1>
    %357 = vector.broadcast %356 : vector<1x128xi1> to vector<16x128xi1>
    %358 = arith.select %357, %352, %355 : vector<16x128xi1>, vector<16x128xf32>
    %c7_i32 = arith.constant 7 : i32
    %359 = vector.broadcast %c7_i32 : i32 to vector<1x128xi32>
    %360 = arith.cmpi eq, %2, %359 : vector<1x128xi32>
    %cst_128 = arith.constant 0.000000e+00 : f32
    %361 = vector.shape_cast %360 : vector<1x128xi1> to vector<1x128xi1>
    %362 = vector.broadcast %361 : vector<1x128xi1> to vector<16x128xi1>
    %363 = vector.broadcast %cst_128 : f32 to vector<16x128xf32>
    %364 = arith.select %362, %358, %363 : vector<16x128xi1>, vector<16x128xf32>
    %c0_129 = arith.constant 0 : index
    %c0_130 = arith.constant 0 : index
    %365 = vector.load %arg3[%c0_129, %c0_130] : memref<128x128xf32, #tpu.memory_space<vmem>>, vector<128x128xf32>
    %cst_131 = arith.constant dense<0.000000e+00> : vector<16x128xf32>
    %366 = tpu.matmul %364, %365, %cst_131 {dimension_numbers = #tpu.dot_dimension_numbers<[1], [0], [0], [1], [0, 0, 1, 1], [], []>} : vector<16x128xf32>, vector<128x128xf32>, vector<16x128xf32> -> vector<16x128xf32>
    %367 = vector.broadcast %c7_i32 : i32 to vector<16x1xi32>
    %368 = arith.cmpi eq, %3, %367 : vector<16x1xi32>
    %cst_132 = arith.constant 0.000000e+00 : f32
    %369 = vector.shape_cast %368 : vector<16x1xi1> to vector<16x1xi1>
    %370 = vector.broadcast %369 : vector<16x1xi1> to vector<16x128xi1>
    %371 = vector.broadcast %cst_132 : f32 to vector<16x128xf32>
    %372 = arith.select %370, %366, %371 : vector<16x128xi1>, vector<16x128xf32>
    %cst_133 = arith.constant dense<0.000000e+00> : vector<128xf32>
    %373 = vector.multi_reduction <add>, %372, %cst_133 [0] : vector<16x128xf32> to vector<128xf32>
    %374 = vector.shape_cast %373 : vector<128xf32> to vector<1x128xf32>
    %cst_134 = arith.constant 0.000000e+00 : f32
    %375 = vector.shape_cast %368 : vector<16x1xi1> to vector<16x1xi1>
    %376 = vector.broadcast %375 : vector<16x1xi1> to vector<16x128xi1>
    %377 = vector.broadcast %cst_134 : f32 to vector<16x128xf32>
    %378 = arith.select %376, %358, %377 : vector<16x128xi1>, vector<16x128xf32>
    %cst_135 = arith.constant dense<0.000000e+00> : vector<128xf32>
    %379 = vector.multi_reduction <add>, %378, %cst_135 [0] : vector<16x128xf32> to vector<128xf32>
    %380 = vector.shape_cast %379 : vector<128xf32> to vector<1x128xf32>
    %381 = math.absf %374 : vector<1x128xf32>
    %cst_136 = arith.constant 1.000000e-30 : f32
    %382 = vector.broadcast %cst_136 : f32 to vector<1x128xf32>
    %383 = arith.cmpf olt, %381, %382 : vector<1x128xf32>
    %cst_137 = arith.constant 1.000000e-30 : f32
    %384 = vector.broadcast %cst_137 : f32 to vector<1x128xf32>
    %385 = arith.select %383, %384, %374 : vector<1x128xi1>, vector<1x128xf32>
    %386 = tpu.reciprocal %385 {approx = true} : vector<1x128xf32> -> vector<1x128xf32>
    %387 = arith.mulf %385, %386 : vector<1x128xf32>
    %cst_138 = arith.constant 2.000000e+00 : f32
    %388 = vector.broadcast %cst_138 : f32 to vector<1x128xf32>
    %389 = arith.subf %388, %387 : vector<1x128xf32>
    %390 = arith.mulf %386, %389 : vector<1x128xf32>
    %391 = vector.broadcast %390 : vector<1x128xf32> to vector<16x128xf32>
    %392 = arith.mulf %366, %391 : vector<16x128xf32>
    %393 = vector.broadcast %380 : vector<1x128xf32> to vector<16x128xf32>
    %394 = arith.mulf %393, %392 : vector<16x128xf32>
    %395 = arith.subf %358, %394 : vector<16x128xf32>
    %396 = vector.shape_cast %360 : vector<1x128xi1> to vector<1x128xi1>
    %397 = vector.broadcast %396 : vector<1x128xi1> to vector<16x128xi1>
    %398 = arith.select %397, %392, %395 : vector<16x128xi1>, vector<16x128xf32>
    %c8_i32_139 = arith.constant 8 : i32
    %c8_i32_140 = arith.constant 8 : i32
    %399 = vector.broadcast %c8_i32_140 : i32 to vector<16x1xi32>
    %400 = arith.cmpi eq, %3, %399 : vector<16x1xi32>
    %cst_141 = arith.constant 0.000000e+00 : f32
    %401 = vector.shape_cast %400 : vector<16x1xi1> to vector<16x1xi1>
    %402 = vector.broadcast %401 : vector<16x1xi1> to vector<16x128xi1>
    %403 = vector.broadcast %cst_141 : f32 to vector<16x128xf32>
    %404 = arith.select %402, %398, %403 : vector<16x128xi1>, vector<16x128xf32>
    %cst_142 = arith.constant dense<0.000000e+00> : vector<128xf32>
    %405 = vector.multi_reduction <add>, %404, %cst_142 [0] : vector<16x128xf32> to vector<128xf32>
    %406 = vector.shape_cast %405 : vector<128xf32> to vector<1x128xf32>
    %c0_143 = arith.constant 0 : index
    %c0_144 = arith.constant 0 : index
    %c0_145 = arith.constant 0 : index
    %407 = vector.load %arg10[%c0_143, %c0_144, %c0_145] : memref<1x1x128xf32, #tpu.memory_space<vmem>>, vector<1x1x128xf32>
    %408 = vector.shape_cast %407 : vector<1x1x128xf32> to vector<1x128xf32>
    %409 = vector.shape_cast %406 : vector<1x128xf32> to vector<1x1x128xf32>
    tpu.vector_store %arg10[%c0_143, %c0_144, %c0_145], %409 {strides = array<i32>} : memref<1x1x128xf32, #tpu.memory_space<vmem>>, vector<1x1x128xf32>,
    return
  }
  func.func @transform_0(%arg0: i32) -> (i32, i32, i32) {
    %c0_i32 = arith.constant 0 : i32
    %c0_i32_0 = arith.constant 0 : i32
    %c0_i32_1 = arith.constant 0 : i32
    %c0_i32_2 = arith.constant 0 : i32
    return %c0_i32, %c0_i32_0, %c0_i32_1 : i32, i32, i32
  }
  func.func @transform_1(%arg0: i32) -> (i32, i32) {
    %c0_i32 = arith.constant 0 : i32
    %c0_i32_0 = arith.constant 0 : i32
    %c0_i32_1 = arith.constant 0 : i32
    return %c0_i32, %c0_i32_0 : i32, i32
  }
  func.func @transform_2(%arg0: i32) -> (i32, i32) {
    %c0_i32 = arith.constant 0 : i32
    %c0_i32_0 = arith.constant 0 : i32
    %c0_i32_1 = arith.constant 0 : i32
    return %c0_i32, %c0_i32_0 : i32, i32
  }
  func.func @transform_3(%arg0: i32) -> (i32, i32, i32) {
    %c0_i32 = arith.constant 0 : i32
    %c0_i32_0 = arith.constant 0 : i32
    %c0_i32_1 = arith.constant 0 : i32
    return %arg0, %c0_i32, %c0_i32_0 : i32, i32, i32
  }
  func.func @transform_4(%arg0: i32) -> (i32, i32, i32) {
    %c0_i32 = arith.constant 0 : i32
    %c0_i32_0 = arith.constant 0 : i32
    %c0_i32_1 = arith.constant 0 : i32
    return %arg0, %c0_i32, %c0_i32_0 : i32, i32, i32
  }
  func.func @transform_5(%arg0: i32) -> (i32, i32, i32) {
    %c0_i32 = arith.constant 0 : i32
    %c0_i32_0 = arith.constant 0 : i32
    %c0_i32_1 = arith.constant 0 : i32
    return %arg0, %c0_i32, %c0_i32_0 : i32, i32, i32
  }
  func.func @transform_6(%arg0: i32) -> (i32, i32, i32) {
    %c0_i32 = arith.constant 0 : i32
    %c0_i32_0 = arith.constant 0 : i32
    %c0_i32_1 = arith.constant 0 : i32
    return %arg0, %c0_i32, %c0_i32_0 : i32, i32, i32
  }
  func.func @transform_7(%arg0: i32) -> (i32, i32, i32) {
    %c0_i32 = arith.constant 0 : i32
    %c0_i32_0 = arith.constant 0 : i32
    %c0_i32_1 = arith.constant 0 : i32
    return %arg0, %c0_i32, %c0_i32_0 : i32, i32, i32
  }
  func.func @transform_8(%arg0: i32) -> (i32, i32, i32) {
    %c0_i32 = arith.constant 0 : i32
    %c0_i32_0 = arith.constant 0 : i32
    %c0_i32_1 = arith.constant 0 : i32
    return %arg0, %c0_i32, %c0_i32_0 : i32, i32, i32
  }
  func.func @transform_9(%arg0: i32) -> (i32, i32, i32) {
    %c0_i32 = arith.constant 0 : i32
    %c0_i32_0 = arith.constant 0 : i32
    %c0_i32_1 = arith.constant 0 : i32
    return %arg0, %c0_i32, %c0_i32_0 : i32, i32, i32
  }
}

</mosaic_0001>

<llo_original>
// kernel: tpu_custom_call.1
$region0: #{tpu_custom_call.1}
  #allocation0 [shape = 'u32[]', space=smem, size = 0x4, offset = 0x4, fixed_abs, tag = 'smem constant byte address 0x4 - core index']
  #allocation1 [shape = 'u32[144,128]{1,0:T(1,128)}', space=vmem, size = 0x12000, scoped, tag = 'internal scratch']
  %s0 = inlined_call_operand.vmem [shape: f32[2,8,128], index: 0, kind: input, shape index: {}]
  %s1 = inlined_call_operand.vmem [shape: f32[16,128], index: 1, kind: input, shape index: {}]
  %s2 = inlined_call_operand.vmem [shape: f32[128,128], index: 2, kind: input, shape index: {}]
  %s3 = inlined_call_operand.vmem [shape: f32[1,1,128], index: 3, kind: input, shape index: {}]
  %s4 = inlined_call_operand.vmem [shape: f32[1,1,128], index: 4, kind: input, shape index: {}]
  %s5 = inlined_call_operand.vmem [shape: f32[2,8,32], index: 5, kind: input, shape index: {}]
  %s6 = inlined_call_operand.vmem [shape: f32[2,32,16], index: 6, kind: input, shape index: {}]
  %s7 = inlined_call_operand.hbm [shape: f32[2,8,32], index: 7, kind: input, shape index: {}]
  %s8 = inlined_call_operand.vmem [shape: f32[2,32,16], index: 8, kind: input, shape index: {}]
  %s9 = inlined_call_operand.hbm [shape: f32[1,1,128], index: 9, kind: output, shape index: {}]
  %s10 = sld [smem:[#allocation0]]
  $region50: #{tpu_custom_call.1} parent=0
    _
  %s12 = ssub.s32 1, %s10
  %s13 = scalar_select 0, %s12, %s10
  $region1: #{tpu_custom_call.1} parent=0
    #allocation2 [shape = 'u8[8192]{0}', space=vmem, size = 0x2000, scoped, tag = 'input window, operand 7, single buffered']
    #allocation3 [shape = 's32[1]{0}', space=sflag, size = 0x4, scoped, tag = 'scoped memory for tpu_custom_call.1']
    #allocation4 [shape = 's32[1]{0}', space=sflag, size = 0x4, scoped, tag = 'scoped memory for tpu_custom_call.1']
    #allocation5 [shape = 'u8[512]{0}', space=vmem, size = 0x400, scoped, tag = 'output window, operand 0, single buffered']
    %14 = vsyncpa [#allocation3], 0
    %15 = vsyncpa [#allocation4], 0
    // Predicated region
    $region2: #{tpu_custom_call.1} parent=1 // pred_check
      _
    $region3: #{tpu_custom_call.1} parent=1 // pred_check_branch
      %17 = sbr.rel (0) target = $region5
    $region4: #{tpu_custom_call.1} parent=1 // pred_region
      _
    $region5: #{tpu_custom_call.1} parent=1 // pred_fallthru
      _
    // Predicated region
    $region6: #{tpu_custom_call.1} parent=1 // pred_check
      _
    $region7: #{tpu_custom_call.1} parent=1 // pred_check_branch
      %19 = sbr.rel (0) target = $region9
    $region8: #{tpu_custom_call.1} parent=1 // pred_region
      _
    $region9: #{tpu_custom_call.1} parent=1 // pred_fallthru
      _
    // Predicated region
    $region10: #{tpu_custom_call.1} parent=1 // pred_check
      _
    $region11: #{tpu_custom_call.1} parent=1 // pred_check_branch
      %21 = sbr.rel (0) target = $region13
    $region12: #{tpu_custom_call.1} parent=1 // pred_region
      _
    $region13: #{tpu_custom_call.1} parent=1 // pred_fallthru
      _
    // Predicated region
    $region14: #{tpu_custom_call.1} parent=1 // pred_check
      _
    $region15: #{tpu_custom_call.1} parent=1 // pred_check_branch
      %23 = sbr.rel (0) target = $region17
    $region16: #{tpu_custom_call.1} parent=1 // pred_region
      _
    $region17: #{tpu_custom_call.1} parent=1 // pred_fallthru
      _
    // Predicated region
    $region18: #{tpu_custom_call.1} parent=1 // pred_check
      _
    $region19: #{tpu_custom_call.1} parent=1 // pred_check_branch
      %25 = sbr.rel (0) target = $region21
    $region20: #{tpu_custom_call.1} parent=1 // pred_region
      _
    $region21: #{tpu_custom_call.1} parent=1 // pred_fallthru
      _
    // Predicated region
    $region22: #{tpu_custom_call.1} parent=1 // pred_check
      _
    $region23: #{tpu_custom_call.1} parent=1 // pred_check_branch
      %27 = sbr.rel (0) target = $region25
    $region24: #{tpu_custom_call.1} parent=1 // pred_region
      _
    $region25: #{tpu_custom_call.1} parent=1 // pred_fallthru
      _
    // Predicated region
    $region26: #{tpu_custom_call.1} parent=1 // pred_check
      _
    $region27: #{tpu_custom_call.1} parent=1 // pred_check_branch
      %29 = sbr.rel (0) target = $region29
    $region28: #{tpu_custom_call.1} parent=1 // pred_region
      _
    $region29: #{tpu_custom_call.1} parent=1 // pred_fallthru
      _
    // Predicated region
    $region30: #{tpu_custom_call.1} parent=1 // pred_check
      _
    $region31: #{tpu_custom_call.1} parent=1 // pred_check_branch
      %31 = sbr.rel (0) target = $region33
    $region32: #{tpu_custom_call.1} parent=1 // pred_region
      %s33 = ssub.s32 256, 256
      %34 = vsyncadd [#allocation3], %s33
      %s35 = sshll.u32 [#allocation2], 4
      %s36 = int_to_ptr.vmem [resolvable:$true] %s35
      %41 = dma.hbm_to_vmem [thread:$0]  %s7, 256, %s36, [#allocation3], 128, 128, 8
    $region33: #{tpu_custom_call.1} parent=1 // pred_fallthru
      _
    // Predicated region
    $region34: #{tpu_custom_call.1} parent=1 // pred_check
      _
    $region35: #{tpu_custom_call.1} parent=1 // pred_check_branch
      %43 = sbr.rel (0) target = $region37
    $region36: #{tpu_custom_call.1} parent=1 // pred_region
      _
    $region37: #{tpu_custom_call.1} parent=1 // pred_fallthru
      _
    // Predicated region
    $region38: #{tpu_custom_call.1} parent=1 // pred_check
      _
    $region39: #{tpu_custom_call.1} parent=1 // pred_check_branch
      %45 = sbr.rel (0) target = $region41
    $region40: #{tpu_custom_call.1} parent=1 // pred_region
      %46 = dma.done [#allocation3], 256
    $region41: #{tpu_custom_call.1} parent=1 // pred_fallthru
      _
    %v47 = vlaneseq
    %v48 = vand.u32 %v47, 127
    %vm49 = vcmp.lt.s32.totalorder %v48, 0
    %v50 = vsub.s32 0, %v48
    %v51 = vsel %vm49, %v50, %v48
    %v52 = vshrl.u32 %v51, 3
    %v53 = vand.u32 %v51, 7
    %v54 = vsub.s32 0, %v53
    %v55 = vsel %vm49, %v54, %v53
    %v56 = vlaneseq
    %v57 = vshrl.u32 %v56, 7
    %v58 = vadd.s32 %v57, 8
    %v59 = vld [vmem:[%s3] sm:$0x1]
    %v60 = vld [vmem:[%s4] sm:$0x1]
    %v61 = vrsqrt.pop %v59
    %v62 = vmul.f32 %v59, %v61
    %vm63 = vcmp.eq.f32.partialorder %v59, inf
    %v64 = vsel %vm63, %v59, %v62
    %vm65 = vcmp.eq.f32.partialorder %v59, 0.0
    %v66 = vand.u32 %v59, 2147483648
    %v67 = vsel %vm65, %v66, %v64
    %v68 = vrsqrt.pop %v60
    %v69 = vmul.f32 %v60, %v68
    %vm70 = vcmp.eq.f32.partialorder %v60, inf
    %v71 = vsel %vm70, %v60, %v69
    %vm72 = vcmp.eq.f32.partialorder %v60, 0.0
    %v73 = vand.u32 %v60, 2147483648
    %v74 = vsel %vm72, %v73, %v71
    %v75 = vmul.f32 %v67, %v67
    %v76 = vadd.f32 %v75, 1.0
    %v77 = vrcp.pop %v76
    %v78 = vmul.f32 1.0, %v77
    %v79 = vmul.f32 %v74, %v74
    %v80 = vadd.f32 %v79, 1.0
    %v81 = vrcp.pop %v80
    %v82 = vmul.f32 1.0, %v81
    %v83 = vmul.f32 %v74, %v82
    %v84 = vmul.f32 %v67, %v78
    %v85 = vsub.f32 %v83, %v84
    %v86 = vsub.f32 %v82, %v78
    %v87 = vmul.f32 %v85, %v85
    %v88 = vmul.f32 %v86, %v86
    %v89 = vadd.f32 %v87, %v88
    %v90 = vld [vmem:[%s5] sm:$0xff]
    %v91 = vld [vmem:[%s6] sm:$0xff]
    %v92 = vld [vmem:[%s6 + $0x8] sm:$0xff]
    %v93 = vld [vmem:[%s6 + $0x10] sm:$0xff]
    %v94 = vld [vmem:[%s6 + $0x18] sm:$0xff]
    %vm95 = vcmask 261120
    %v97 = vsel %vm95, %v90, 0
    %99 = vmatprep.subr.mxu0 0.0
    %100 = vmatpush1.msra.mxu0 %v91
    %101 = vmatprep.subr.mxu0 0.0
    %102 = vmatpush1.msra.mxu0 %v92
    %103 = vmatprep.subr.mxu0 0.0
    %104 = vmatpush1.msra.mxu0 %v93
    %105 = vmatprep.subr.mxu0 0.0
    %106 = vmatpush1.msra.mxu0 %v94
    %107 = vmatprep.subr.mxu0 0.0
    %108 = vmatpush1.msra.mxu0 0.0
    %109 = vmatprep.subr.mxu0 0.0
    %110 = vmatpush1.msra.mxu0 0.0
    %111 = vmatprep.subr.mxu0 0.0
    %112 = vmatpush1.msra.mxu0 0.0
    %113 = vmatprep.subr.mxu0 0.0
    %114 = vmatpush1.msra.mxu0 0.0
    %115 = vmatprep.subr.mxu0 0.0
    %116 = vmatpush1.msra.mxu0 0.0
    %117 = vmatprep.subr.mxu0 0.0
    %118 = vmatpush1.msra.mxu0 0.0
    %119 = vmatprep.subr.mxu0 0.0
    %120 = vmatpush1.msra.mxu0 0.0
    %121 = vmatprep.subr.mxu0 0.0
    %122 = vmatpush1.msra.mxu0 0.0
    %123 = vmatprep.subr.mxu0 0.0
    %124 = vmatpush1.msra.mxu0 0.0
    %125 = vmatprep.subr.mxu0 0.0
    %126 = vmatpush1.msra.mxu0 0.0
    %127 = vmatprep.subr.mxu0 0.0
    %128 = vmatpush1.msra.mxu0 0.0
    %129 = vmatprep.subr.mxu0 0.0
    %130 = vmatpush1.msra.mxu0 0.0
    %131 = vmatprep.subr.mxu0 0.0
    %132 = vmatpush1.msra.mxu0 0.0
    %133 = vmatprep.subr.mxu0 0.0
    %134 = vmatpush1.msra.mxu0 0.0
    %135 = vmatprep.subr.mxu0 0.0
    %136 = vmatpush1.msra.mxu0 0.0
    %137 = vmatprep.subr.mxu0 0.0
    %138 = vmatpush1.msra.mxu0 0.0
    %139 = vmatprep.subr.mxu0 0.0
    %140 = vmatpush1.msra.mxu0 0.0
    %141 = vmatprep.subr.mxu0 0.0
    %142 = vmatpush1.msra.mxu0 0.0
    %143 = vmatprep.subr.mxu0 0.0
    %144 = vmatpush1.msra.mxu0 0.0
    %145 = vmatprep.subr.mxu0 0.0
    %146 = vmatpush1.msra.mxu0 0.0
    %147 = vmatprep.subr.mxu0 0.0
    %148 = vmatpush1.msra.mxu0 0.0
    %149 = vmatprep.subr.mxu0 0.0
    %150 = vmatpush1.msra.mxu0 0.0
    %151 = vmatprep.subr.mxu0 0.0
    %152 = vmatpush1.msra.mxu0 0.0
    %153 = vmatprep.subr.mxu0 0.0
    %154 = vmatpush1.msra.mxu0 0.0
    %155 = vmatprep.subr.mxu0 0.0
    %156 = vmatpush1.msra.mxu0 0.0
    %157 = vmatprep.subr.mxu0 0.0
    %158 = vmatpush1.msra.mxu0 0.0
    %159 = vmatprep.subr.mxu0 0.0
    %160 = vmatpush1.msra.mxu0 0.0
    %161 = vmatprep.subr.mxu0 0.0
    %162 = vmatpush1.msra.mxu0 0.0
    %163 = vmatprep.mubr.f32.mxu0 0.0
    %164 = vmatmul.mubr.f32.gmra.mrb[0].mxu0 %v97
    %v165 = vpop.f32.mrb[0].mxu0
    %v166 = vadd.f32 0.0, %v165
    %v167 = vpop.f32.mrb[0].mxu0
    %168 = vdwg.mxu0
    %v169 = vld [vmem:[#allocation2] sm:$0xff]
    %v170 = vld [vmem:[%s8] sm:$0xff]
    %v171 = vld [vmem:[%s8 + $0x8] sm:$0xff]
    %v172 = vld [vmem:[%s8 + $0x10] sm:$0xff]
    %v173 = vld [vmem:[%s8 + $0x18] sm:$0xff]
    %v175 = vsel %vm95, %v169, 0
    %177 = vmatprep.subr.mxu0 0.0
    %178 = vmatpush1.msra.mxu0 %v170
    %179 = vmatprep.subr.mxu0 0.0
    %180 = vmatpush1.msra.mxu0 %v171
    %181 = vmatprep.subr.mxu0 0.0
    %182 = vmatpush1.msra.mxu0 %v172
    %183 = vmatprep.subr.mxu0 0.0
    %184 = vmatpush1.msra.mxu0 %v173
    %185 = vmatprep.subr.mxu0 0.0
    %186 = vmatpush1.msra.mxu0 0.0
    %187 = vmatprep.subr.mxu0 0.0
    %188 = vmatpush1.msra.mxu0 0.0
    %189 = vmatprep.subr.mxu0 0.0
    %190 = vmatpush1.msra.mxu0 0.0
    %191 = vmatprep.subr.mxu0 0.0
    %192 = vmatpush1.msra.mxu0 0.0
    %193 = vmatprep.subr.mxu0 0.0
    %194 = vmatpush1.msra.mxu0 0.0
    %195 = vmatprep.subr.mxu0 0.0
    %196 = vmatpush1.msra.mxu0 0.0
    %197 = vmatprep.subr.mxu0 0.0
    %198 = vmatpush1.msra.mxu0 0.0
    %199 = vmatprep.subr.mxu0 0.0
    %200 = vmatpush1.msra.mxu0 0.0
    %201 = vmatprep.subr.mxu0 0.0
    %202 = vmatpush1.msra.mxu0 0.0
    %203 = vmatprep.subr.mxu0 0.0
    %204 = vmatpush1.msra.mxu0 0.0
    %205 = vmatprep.subr.mxu0 0.0
    %206 = vmatpush1.msra.mxu0 0.0
    %207 = vmatprep.subr.mxu0 0.0
    %208 = vmatpush1.msra.mxu0 0.0
    %209 = vmatprep.subr.mxu0 0.0
    %210 = vmatpush1.msra.mxu0 0.0
    %211 = vmatprep.subr.mxu0 0.0
    %212 = vmatpush1.msra.mxu0 0.0
    %213 = vmatprep.subr.mxu0 0.0
    %214 = vmatpush1.msra.mxu0 0.0
    %215 = vmatprep.subr.mxu0 0.0
    %216 = vmatpush1.msra.mxu0 0.0
    %217 = vmatprep.subr.mxu0 0.0
    %218 = vmatpush1.msra.mxu0 0.0
    %219 = vmatprep.subr.mxu0 0.0
    %220 = vmatpush1.msra.mxu0 0.0
    %221 = vmatprep.subr.mxu0 0.0
    %222 = vmatpush1.msra.mxu0 0.0
    %223 = vmatprep.subr.mxu0 0.0
    %224 = vmatpush1.msra.mxu0 0.0
    %225 = vmatprep.subr.mxu0 0.0
    %226 = vmatpush1.msra.mxu0 0.0
    %227 = vmatprep.subr.mxu0 0.0
    %228 = vmatpush1.msra.mxu0 0.0
    %229 = vmatprep.subr.mxu0 0.0
    %230 = vmatpush1.msra.mxu0 0.0
    %231 = vmatprep.subr.mxu0 0.0
    %232 = vmatpush1.msra.mxu0 0.0
    %233 = vmatprep.subr.mxu0 0.0
    %234 = vmatpush1.msra.mxu0 0.0
    %235 = vmatprep.subr.mxu0 0.0
    %236 = vmatpush1.msra.mxu0 0.0
    %237 = vmatprep.subr.mxu0 0.0
    %238 = vmatpush1.msra.mxu0 0.0
    %239 = vmatprep.subr.mxu0 0.0
    %240 = vmatpush1.msra.mxu0 0.0
    %241 = vmatprep.mubr.f32.mxu0 0.0
    %242 = vmatmul.mubr.f32.gmra.mrb[0].mxu0 %v175
    %v243 = vpop.f32.mrb[0].mxu0
    %v244 = vadd.f32 0.0, %v243
    %v245 = vpop.f32.mrb[0].mxu0
    %246 = vdwg.mxu0
    %vm247 = vcmask 130048
    %v249 = vsel %vm247, %v166, 0
    %v252 = vsel %vm247, %v244, 0
    %254 = vmatprep.subr.mxu0 0.0
    %255 = vmatpush1.xpose.msra.mxu0 %v249
    %256 = vmatprep.subr.mxu0 0.0
    %257 = vmatpush1.xpose.msra.mxu0 0.0
    %258 = vmatprep.subr.mxu0 0.0
    %259 = vmatpush1.xpose.msra.mxu0 0.0
    %260 = vmatprep.subr.mxu0 0.0
    %261 = vmatpush1.xpose.msra.mxu0 0.0
    %262 = vmatprep.subr.mxu0 0.0
    %263 = vmatpush1.xpose.msra.mxu0 0.0
    %264 = vmatprep.subr.mxu0 0.0
    %265 = vmatpush1.xpose.msra.mxu0 0.0
    %266 = vmatprep.subr.mxu0 0.0
    %267 = vmatpush1.xpose.msra.mxu0 0.0
    %268 = vmatprep.subr.mxu0 0.0
    %269 = vmatpush1.xpose.msra.mxu0 0.0
    %270 = vmatprep.subr.mxu0 0.0
    %271 = vmatpush1.xpose.msra.mxu0 0.0
    %272 = vmatprep.subr.mxu0 0.0
    %273 = vmatpush1.xpose.msra.mxu0 0.0
    %274 = vmatprep.subr.mxu0 0.0
    %275 = vmatpush1.xpose.msra.mxu0 0.0
    %276 = vmatprep.subr.mxu0 0.0
    %277 = vmatpush1.xpose.msra.mxu0 0.0
    %278 = vmatprep.subr.mxu0 0.0
    %279 = vmatpush1.xpose.msra.mxu0 0.0
    %280 = vmatprep.subr.mxu0 0.0
    %281 = vmatpush1.xpose.msra.mxu0 0.0
    %282 = vmatprep.subr.mxu0 0.0
    %283 = vmatpush1.xpose.msra.mxu0 0.0
    %284 = vmatprep.subr.mxu0 0.0
    %285 = vmatpush1.xpose.msra.mxu0 0.0
    %286 = vmatprep.subr.mxu0 0.0
    %287 = vmatpush1.xpose.msra.mxu0 0.0
    %288 = vmatprep.subr.mxu0 0.0
    %289 = vmatpush1.xpose.msra.mxu0 0.0
    %290 = vmatprep.subr.mxu0 0.0
    %291 = vmatpush1.xpose.msra.mxu0 0.0
    %292 = vmatprep.subr.mxu0 0.0
    %293 = vmatpush1.xpose.msra.mxu0 0.0
    %294 = vmatprep.subr.mxu0 0.0
    %295 = vmatpush1.xpose.msra.mxu0 0.0
    %296 = vmatprep.subr.mxu0 0.0
    %297 = vmatpush1.xpose.msra.mxu0 0.0
    %298 = vmatprep.subr.mxu0 0.0
    %299 = vmatpush1.xpose.msra.mxu0 0.0
    %300 = vmatprep.subr.mxu0 0.0
    %301 = vmatpush1.xpose.msra.mxu0 0.0
    %302 = vmatprep.subr.mxu0 0.0
    %303 = vmatpush1.xpose.msra.mxu0 0.0
    %304 = vmatprep.subr.mxu0 0.0
    %305 = vmatpush1.xpose.msra.mxu0 0.0
    %306 = vmatprep.subr.mxu0 0.0
    %307 = vmatpush1.xpose.msra.mxu0 0.0
    %308 = vmatprep.subr.mxu0 0.0
    %309 = vmatpush1.xpose.msra.mxu0 0.0
    %310 = vmatprep.subr.mxu0 0.0
    %311 = vmatpush1.xpose.msra.mxu0 0.0
    %312 = vmatprep.subr.mxu0 0.0
    %313 = vmatpush1.xpose.msra.mxu0 0.0
    %314 = vmatprep.subr.mxu0 0.0
    %315 = vmatpush1.xpose.msra.mxu0 0.0
    %316 = vmatprep.subr.mxu0 0.0
    %317 = vmatpush1.xpose.msra.mxu0 0.0
    %318 = vmatprep.mubr.f32.mxu0 0.0
    %319 = vmatmul.mubr.f32.gmra.mrb[0].mxu0 %v249
    %v320 = vpop.f32.mrb[0].mxu0
    %v321 = vadd.f32 0.0, %v320
    %v322 = vpop.f32.mrb[0].mxu0
    %323 = vmatprep.mubr.f32.mxu0 0.0
    %324 = vmatmul.mubr.f32.gmra.mrb[0].mxu0 %v252
    %v325 = vpop.f32.mrb[0].mxu0
    %v326 = vadd.f32 0.0, %v325
    %v327 = vpop.f32.mrb[0].mxu0
    %328 = vdwg.mxu0
    %v329 = vld [vmem:[%s0] sm:$0xff]
    %s330 = scalar_lea.vmem %s5, 8
    %v331 = vld [vmem:[%s330] sm:$0xff]
    %s332 = scalar_lea.vmem %s6, 32
    %v333 = vld [vmem:[%s332] sm:$0xff]
    %v334 = vld [vmem:[%s332 + $0x8] sm:$0xff]
    %v335 = vld [vmem:[%s332 + $0x10] sm:$0xff]
    %v336 = vld [vmem:[%s332 + $0x18] sm:$0xff]
    %v338 = vsel %vm95, %v331, 0
    %340 = vmatprep.subr.mxu0 0.0
    %341 = vmatpush1.msra.mxu0 %v333
    %342 = vmatprep.subr.mxu0 0.0
    %343 = vmatpush1.msra.mxu0 %v334
    %344 = vmatprep.subr.mxu0 0.0
    %345 = vmatpush1.msra.mxu0 %v335
    %346 = vmatprep.subr.mxu0 0.0
    %347 = vmatpush1.msra.mxu0 %v336
    %348 = vmatprep.subr.mxu0 0.0
    %349 = vmatpush1.msra.mxu0 0.0
    %350 = vmatprep.subr.mxu0 0.0
    %351 = vmatpush1.msra.mxu0 0.0
    %352 = vmatprep.subr.mxu0 0.0
    %353 = vmatpush1.msra.mxu0 0.0
    %354 = vmatprep.subr.mxu0 0.0
    %355 = vmatpush1.msra.mxu0 0.0
    %356 = vmatprep.subr.mxu0 0.0
    %357 = vmatpush1.msra.mxu0 0.0
    %358 = vmatprep.subr.mxu0 0.0
    %359 = vmatpush1.msra.mxu0 0.0
    %360 = vmatprep.subr.mxu0 0.0
    %361 = vmatpush1.msra.mxu0 0.0
    %362 = vmatprep.subr.mxu0 0.0
    %363 = vmatpush1.msra.mxu0 0.0
    %364 = vmatprep.subr.mxu0 0.0
    %365 = vmatpush1.msra.mxu0 0.0
    %366 = vmatprep.subr.mxu0 0.0
    %367 = vmatpush1.msra.mxu0 0.0
    %368 = vmatprep.subr.mxu0 0.0
    %369 = vmatpush1.msra.mxu0 0.0
    %370 = vmatprep.subr.mxu0 0.0
    %371 = vmatpush1.msra.mxu0 0.0
    %372 = vmatprep.subr.mxu0 0.0
    %373 = vmatpush1.msra.mxu0 0.0
    %374 = vmatprep.subr.mxu0 0.0
    %375 = vmatpush1.msra.mxu0 0.0
    %376 = vmatprep.subr.mxu0 0.0
    %377 = vmatpush1.msra.mxu0 0.0
    %378 = vmatprep.subr.mxu0 0.0
    %379 = vmatpush1.msra.mxu0 0.0
    %380 = vmatprep.subr.mxu0 0.0
    %381 = vmatpush1.msra.mxu0 0.0
    %382 = vmatprep.subr.mxu0 0.0
    %383 = vmatpush1.msra.mxu0 0.0
    %384 = vmatprep.subr.mxu0 0.0
    %385 = vmatpush1.msra.mxu0 0.0
    %386 = vmatprep.subr.mxu0 0.0
    %387 = vmatpush1.msra.mxu0 0.0
    %388 = vmatprep.subr.mxu0 0.0
    %389 = vmatpush1.msra.mxu0 0.0
    %390 = vmatprep.subr.mxu0 0.0
    %391 = vmatpush1.msra.mxu0 0.0
    %392 = vmatprep.subr.mxu0 0.0
    %393 = vmatpush1.msra.mxu0 0.0
    %394 = vmatprep.subr.mxu0 0.0
    %395 = vmatpush1.msra.mxu0 0.0
    %396 = vmatprep.subr.mxu0 0.0
    %397 = vmatpush1.msra.mxu0 0.0
    %398 = vmatprep.subr.mxu0 0.0
    %399 = vmatpush1.msra.mxu0 0.0
    %400 = vmatprep.subr.mxu0 0.0
    %401 = vmatpush1.msra.mxu0 0.0
    %402 = vmatprep.subr.mxu0 0.0
    %403 = vmatpush1.msra.mxu0 0.0
    %404 = vmatprep.mubr.f32.mxu0 0.0
    %405 = vmatmul.mubr.f32.gmra.mrb[0].mxu0 %v338
    %v406 = vpop.f32.mrb[0].mxu0
    %v407 = vadd.f32 0.0, %v406
    %v408 = vpop.f32.mrb[0].mxu0
    %409 = vdwg.mxu0
    %s410 = scalar_lea.vmem [#allocation2], 8
    %v411 = vld [vmem:[%s410] sm:$0xff]
    %s412 = scalar_lea.vmem %s8, 32
    %v413 = vld [vmem:[%s412] sm:$0xff]
    %v414 = vld [vmem:[%s412 + $0x8] sm:$0xff]
    %v415 = vld [vmem:[%s412 + $0x10] sm:$0xff]
    %v416 = vld [vmem:[%s412 + $0x18] sm:$0xff]
    %v418 = vsel %vm95, %v411, 0
    %420 = vmatprep.subr.mxu0 0.0
    %421 = vmatpush1.msra.mxu0 %v413
    %422 = vmatprep.subr.mxu0 0.0
    %423 = vmatpush1.msra.mxu0 %v414
    %424 = vmatprep.subr.mxu0 0.0
    %425 = vmatpush1.msra.mxu0 %v415
    %426 = vmatprep.subr.mxu0 0.0
    %427 = vmatpush1.msra.mxu0 %v416
    %428 = vmatprep.subr.mxu0 0.0
    %429 = vmatpush1.msra.mxu0 0.0
    %430 = vmatprep.subr.mxu0 0.0
    %431 = vmatpush1.msra.mxu0 0.0
    %432 = vmatprep.subr.mxu0 0.0
    %433 = vmatpush1.msra.mxu0 0.0
    %434 = vmatprep.subr.mxu0 0.0
    %435 = vmatpush1.msra.mxu0 0.0
    %436 = vmatprep.subr.mxu0 0.0
    %437 = vmatpush1.msra.mxu0 0.0
    %438 = vmatprep.subr.mxu0 0.0
    %439 = vmatpush1.msra.mxu0 0.0
    %440 = vmatprep.subr.mxu0 0.0
    %441 = vmatpush1.msra.mxu0 0.0
    %442 = vmatprep.subr.mxu0 0.0
    %443 = vmatpush1.msra.mxu0 0.0
    %444 = vmatprep.subr.mxu0 0.0
    %445 = vmatpush1.msra.mxu0 0.0
    %446 = vmatprep.subr.mxu0 0.0
    %447 = vmatpush1.msra.mxu0 0.0
    %448 = vmatprep.subr.mxu0 0.0
    %449 = vmatpush1.msra.mxu0 0.0
    %450 = vmatprep.subr.mxu0 0.0
    %451 = vmatpush1.msra.mxu0 0.0
    %452 = vmatprep.subr.mxu0 0.0
    %453 = vmatpush1.msra.mxu0 0.0
    %454 = vmatprep.subr.mxu0 0.0
    %455 = vmatpush1.msra.mxu0 0.0
    %456 = vmatprep.subr.mxu0 0.0
    %457 = vmatpush1.msra.mxu0 0.0
    %458 = vmatprep.subr.mxu0 0.0
    %459 = vmatpush1.msra.mxu0 0.0
    %460 = vmatprep.subr.mxu0 0.0
    %461 = vmatpush1.msra.mxu0 0.0
    %462 = vmatprep.subr.mxu0 0.0
    %463 = vmatpush1.msra.mxu0 0.0
    %464 = vmatprep.subr.mxu0 0.0
    %465 = vmatpush1.msra.mxu0 0.0
    %466 = vmatprep.subr.mxu0 0.0
    %467 = vmatpush1.msra.mxu0 0.0
    %468 = vmatprep.subr.mxu0 0.0
    %469 = vmatpush1.msra.mxu0 0.0
    %470 = vmatprep.subr.mxu0 0.0
    %471 = vmatpush1.msra.mxu0 0.0
    %472 = vmatprep.subr.mxu0 0.0
    %473 = vmatpush1.msra.mxu0 0.0
    %474 = vmatprep.subr.mxu0 0.0
    %475 = vmatpush1.msra.mxu0 0.0
    %476 = vmatprep.subr.mxu0 0.0
    %477 = vmatpush1.msra.mxu0 0.0
    %478 = vmatprep.subr.mxu0 0.0
    %479 = vmatpush1.msra.mxu0 0.0
    %480 = vmatprep.subr.mxu0 0.0
    %481 = vmatpush1.msra.mxu0 0.0
    %482 = vmatprep.subr.mxu0 0.0
    %483 = vmatpush1.msra.mxu0 0.0
    %484 = vmatprep.mubr.f32.mxu0 0.0
    %485 = vmatmul.mubr.f32.gmra.mrb[0].mxu0 %v418
    %v486 = vpop.f32.mrb[0].mxu0
    %v487 = vadd.f32 0.0, %v486
    %v488 = vpop.f32.mrb[0].mxu0
    %489 = vdwg.mxu0
    %v491 = vsel %vm247, %v407, 0
    %v494 = vsel %vm247, %v487, 0
    %496 = vmatprep.subr.mxu0 0.0
    %497 = vmatpush1.xpose.msra.mxu0 %v491
    %498 = vmatprep.subr.mxu0 0.0
    %499 = vmatpush1.xpose.msra.mxu0 0.0
    %500 = vmatprep.subr.mxu0 0.0
    %501 = vmatpush1.xpose.msra.mxu0 0.0
    %502 = vmatprep.subr.mxu0 0.0
    %503 = vmatpush1.xpose.msra.mxu0 0.0
    %504 = vmatprep.subr.mxu0 0.0
    %505 = vmatpush1.xpose.msra.mxu0 0.0
    %506 = vmatprep.subr.mxu0 0.0
    %507 = vmatpush1.xpose.msra.mxu0 0.0
    %508 = vmatprep.subr.mxu0 0.0
    %509 = vmatpush1.xpose.msra.mxu0 0.0
    %510 = vmatprep.subr.mxu0 0.0
    %511 = vmatpush1.xpose.msra.mxu0 0.0
    %512 = vmatprep.subr.mxu0 0.0
    %513 = vmatpush1.xpose.msra.mxu0 0.0
    %514 = vmatprep.subr.mxu0 0.0
    %515 = vmatpush1.xpose.msra.mxu0 0.0
    %516 = vmatprep.subr.mxu0 0.0
    %517 = vmatpush1.xpose.msra.mxu0 0.0
    %518 = vmatprep.subr.mxu0 0.0
    %519 = vmatpush1.xpose.msra.mxu0 0.0
    %520 = vmatprep.subr.mxu0 0.0
    %521 = vmatpush1.xpose.msra.mxu0 0.0
    %522 = vmatprep.subr.mxu0 0.0
    %523 = vmatpush1.xpose.msra.mxu0 0.0
    %524 = vmatprep.subr.mxu0 0.0
    %525 = vmatpush1.xpose.msra.mxu0 0.0
    %526 = vmatprep.subr.mxu0 0.0
    %527 = vmatpush1.xpose.msra.mxu0 0.0
    %528 = vmatprep.subr.mxu0 0.0
    %529 = vmatpush1.xpose.msra.mxu0 0.0
    %530 = vmatprep.subr.mxu0 0.0
    %531 = vmatpush1.xpose.msra.mxu0 0.0
    %532 = vmatprep.subr.mxu0 0.0
    %533 = vmatpush1.xpose.msra.mxu0 0.0
    %534 = vmatprep.subr.mxu0 0.0
    %535 = vmatpush1.xpose.msra.mxu0 0.0
    %536 = vmatprep.subr.mxu0 0.0
    %537 = vmatpush1.xpose.msra.mxu0 0.0
    %538 = vmatprep.subr.mxu0 0.0
    %539 = vmatpush1.xpose.msra.mxu0 0.0
    %540 = vmatprep.subr.mxu0 0.0
    %541 = vmatpush1.xpose.msra.mxu0 0.0
    %542 = vmatprep.subr.mxu0 0.0
    %543 = vmatpush1.xpose.msra.mxu0 0.0
    %544 = vmatprep.subr.mxu0 0.0
    %545 = vmatpush1.xpose.msra.mxu0 0.0
    %546 = vmatprep.subr.mxu0 0.0
    %547 = vmatpush1.xpose.msra.mxu0 0.0
    %548 = vmatprep.subr.mxu0 0.0
    %549 = vmatpush1.xpose.msra.mxu0 0.0
    %550 = vmatprep.subr.mxu0 0.0
    %551 = vmatpush1.xpose.msra.mxu0 0.0
    %552 = vmatprep.subr.mxu0 0.0
    %553 = vmatpush1.xpose.msra.mxu0 0.0
    %554 = vmatprep.subr.mxu0 0.0
    %555 = vmatpush1.xpose.msra.mxu0 0.0
    %556 = vmatprep.subr.mxu0 0.0
    %557 = vmatpush1.xpose.msra.mxu0 0.0
    %558 = vmatprep.subr.mxu0 0.0
    %559 = vmatpush1.xpose.msra.mxu0 0.0
    %560 = vmatprep.mubr.f32.mxu0 0.0
    %561 = vmatmul.mubr.f32.gmra.mrb[0].mxu0 %v491
    %v562 = vpop.f32.mrb[0].mxu0
    %v563 = vadd.f32 0.0, %v562
    %v564 = vpop.f32.mrb[0].mxu0
    %565 = vmatprep.mubr.f32.mxu0 0.0
    %566 = vmatmul.mubr.f32.gmra.mrb[0].mxu0 %v494
    %v567 = vpop.f32.mrb[0].mxu0
    %v568 = vadd.f32 0.0, %v567
    %v569 = vpop.f32.mrb[0].mxu0
    %570 = vdwg.mxu0
    %s571 = scalar_lea.vmem %s0, 8
    %v572 = vld [vmem:[%s571] sm:$0xff]
    %vm573 = vcmask 64512
    %v575 = vsel %vm573, %v563, 0
    %v578 = vsel %vm573, %v568, 0
    %580 = vmatprep.subr.mxu0 0.0
    %581 = vmatpush1.msra.mxu0 %v572
    %582 = vmatprep.subr.mxu0 0.0
    %583 = vmatpush1.msra.mxu0 0.0
    %584 = vmatprep.subr.mxu0 0.0
    %585 = vmatpush1.msra.mxu0 0.0
    %586 = vmatprep.subr.mxu0 0.0
    %587 = vmatpush1.msra.mxu0 0.0
    %588 = vmatprep.subr.mxu0 0.0
    %589 = vmatpush1.msra.mxu0 0.0
    %590 = vmatprep.subr.mxu0 0.0
    %591 = vmatpush1.msra.mxu0 0.0
    %592 = vmatprep.subr.mxu0 0.0
    %593 = vmatpush1.msra.mxu0 0.0
    %594 = vmatprep.subr.mxu0 0.0
    %595 = vmatpush1.msra.mxu0 0.0
    %596 = vmatprep.subr.mxu0 0.0
    %597 = vmatpush1.msra.mxu0 0.0
    %598 = vmatprep.subr.mxu0 0.0
    %599 = vmatpush1.msra.mxu0 0.0
    %600 = vmatprep.subr.mxu0 0.0
    %601 = vmatpush1.msra.mxu0 0.0
    %602 = vmatprep.subr.mxu0 0.0
    %603 = vmatpush1.msra.mxu0 0.0
    %604 = vmatprep.subr.mxu0 0.0
    %605 = vmatpush1.msra.mxu0 0.0
    %606 = vmatprep.subr.mxu0 0.0
    %607 = vmatpush1.msra.mxu0 0.0
    %608 = vmatprep.subr.mxu0 0.0
    %609 = vmatpush1.msra.mxu0 0.0
    %610 = vmatprep.subr.mxu0 0.0
    %611 = vmatpush1.msra.mxu0 0.0
    %612 = vmatprep.subr.mxu0 0.0
    %613 = vmatpush1.msra.mxu0 0.0
    %614 = vmatprep.subr.mxu0 0.0
    %615 = vmatpush1.msra.mxu0 0.0
    %616 = vmatprep.subr.mxu0 0.0
    %617 = vmatpush1.msra.mxu0 0.0
    %618 = vmatprep.subr.mxu0 0.0
    %619 = vmatpush1.msra.mxu0 0.0
    %620 = vmatprep.subr.mxu0 0.0
    %621 = vmatpush1.msra.mxu0 0.0
    %622 = vmatprep.subr.mxu0 0.0
    %623 = vmatpush1.msra.mxu0 0.0
    %624 = vmatprep.subr.mxu0 0.0
    %625 = vmatpush1.msra.mxu0 0.0
    %626 = vmatprep.subr.mxu0 0.0
    %627 = vmatpush1.msra.mxu0 0.0
    %628 = vmatprep.subr.mxu0 0.0
    %629 = vmatpush1.msra.mxu0 0.0
    %630 = vmatprep.subr.mxu0 0.0
    %631 = vmatpush1.msra.mxu0 0.0
    %632 = vmatprep.subr.mxu0 0.0
    %633 = vmatpush1.msra.mxu0 0.0
    %634 = vmatprep.subr.mxu0 0.0
    %635 = vmatpush1.msra.mxu0 0.0
    %636 = vmatprep.subr.mxu0 0.0
    %637 = vmatpush1.msra.mxu0 0.0
    %638 = vmatprep.subr.mxu0 0.0
    %639 = vmatpush1.msra.mxu0 0.0
    %640 = vmatprep.subr.mxu0 0.0
    %641 = vmatpush1.msra.mxu0 0.0
    %642 = vmatprep.subr.mxu0 0.0
    %643 = vmatpush1.msra.mxu0 0.0
    %644 = vmatprep.mubr.f32.mxu0 0.0
    %645 = vmatmul.mubr.f32.gmra.mrb[0].mxu0 %v575
    %v646 = vpop.f32.mrb[0].mxu0
    %v647 = vadd.f32 0.0, %v646
    %v648 = vpop.f32.mrb[0].mxu0
    %649 = vmatprep.mubr.f32.mxu0 0.0
    %650 = vmatmul.mubr.f32.gmra.mrb[0].mxu0 %v578
    %v651 = vpop.f32.mrb[0].mxu0
    %v652 = vadd.f32 0.0, %v651
    %v653 = vpop.f32.mrb[0].mxu0
    %654 = vdwg.mxu0
    %v656 = vsel %vm573, %v321, 0
    %v659 = vsel %vm573, %v326, 0
    %661 = vmatprep.subr.mxu0 0.0
    %662 = vmatpush1.msra.mxu0 %v329
    %663 = vmatprep.subr.mxu0 0.0
    %664 = vmatpush1.msra.mxu0 0.0
    %665 = vmatprep.subr.mxu0 0.0
    %666 = vmatpush1.msra.mxu0 0.0
    %667 = vmatprep.subr.mxu0 0.0
    %668 = vmatpush1.msra.mxu0 0.0
    %669 = vmatprep.subr.mxu0 0.0
    %670 = vmatpush1.msra.mxu0 0.0
    %671 = vmatprep.subr.mxu0 0.0
    %672 = vmatpush1.msra.mxu0 0.0
    %673 = vmatprep.subr.mxu0 0.0
    %674 = vmatpush1.msra.mxu0 0.0
    %675 = vmatprep.subr.mxu0 0.0
    %676 = vmatpush1.msra.mxu0 0.0
    %677 = vmatprep.subr.mxu0 0.0
    %678 = vmatpush1.msra.mxu0 0.0
    %679 = vmatprep.subr.mxu0 0.0
    %680 = vmatpush1.msra.mxu0 0.0
    %681 = vmatprep.subr.mxu0 0.0
    %682 = vmatpush1.msra.mxu0 0.0
    %683 = vmatprep.subr.mxu0 0.0
    %684 = vmatpush1.msra.mxu0 0.0
    %685 = vmatprep.subr.mxu0 0.0
    %686 = vmatpush1.msra.mxu0 0.0
    %687 = vmatprep.subr.mxu0 0.0
    %688 = vmatpush1.msra.mxu0 0.0
    %689 = vmatprep.subr.mxu0 0.0
    %690 = vmatpush1.msra.mxu0 0.0
    %691 = vmatprep.subr.mxu0 0.0
    %692 = vmatpush1.msra.mxu0 0.0
    %693 = vmatprep.subr.mxu0 0.0
    %694 = vmatpush1.msra.mxu0 0.0
    %695 = vmatprep.subr.mxu0 0.0
    %696 = vmatpush1.msra.mxu0 0.0
    %697 = vmatprep.subr.mxu0 0.0
    %698 = vmatpush1.msra.mxu0 0.0
    %699 = vmatprep.subr.mxu0 0.0
    %700 = vmatpush1.msra.mxu0 0.0
    %701 = vmatprep.subr.mxu0 0.0
    %702 = vmatpush1.msra.mxu0 0.0
    %703 = vmatprep.subr.mxu0 0.0
    %704 = vmatpush1.msra.mxu0 0.0
    %705 = vmatprep.subr.mxu0 0.0
    %706 = vmatpush1.msra.mxu0 0.0
    %707 = vmatprep.subr.mxu0 0.0
    %708 = vmatpush1.msra.mxu0 0.0
    %709 = vmatprep.subr.mxu0 0.0
    %710 = vmatpush1.msra.mxu0 0.0
    %711 = vmatprep.subr.mxu0 0.0
    %712 = vmatpush1.msra.mxu0 0.0
    %713 = vmatprep.subr.mxu0 0.0
    %714 = vmatpush1.msra.mxu0 0.0
    %715 = vmatprep.subr.mxu0 0.0
    %716 = vmatpush1.msra.mxu0 0.0
    %717 = vmatprep.subr.mxu0 0.0
    %718 = vmatpush1.msra.mxu0 0.0
    %719 = vmatprep.subr.mxu0 0.0
    %720 = vmatpush1.msra.mxu0 0.0
    %721 = vmatprep.subr.mxu0 0.0
    %722 = vmatpush1.msra.mxu0 0.0
    %723 = vmatprep.subr.mxu0 0.0
    %724 = vmatpush1.msra.mxu0 0.0
    %725 = vmatprep.mubr.f32.mxu0 0.0
    %726 = vmatmul.mubr.f32.gmra.mrb[0].mxu0 %v656
    %v727 = vpop.f32.mrb[0].mxu0
    %v728 = vadd.f32 %v647, %v727
    %v729 = vpop.f32.mrb[0].mxu0
    %730 = vmatprep.mubr.f32.mxu0 0.0
    %731 = vmatmul.mubr.f32.gmra.mrb[0].mxu0 %v659
    %v732 = vpop.f32.mrb[0].mxu0
    %v733 = vadd.f32 %v652, %v732
    %v734 = vpop.f32.mrb[0].mxu0
    %735 = vdwg.mxu0
    %v736 = vld [vmem:[%s1] sm:$0xff]
    %v737 = vld [vmem:[%s1 + $0x8] sm:$0xff]
    %v738 = vmul.f32 %v728, %v736
    %v739 = vmul.f32 %v733, %v737
    %v740 = vadd.f32 %v738, %v739
    %v741 = vrot.slane %v740, 4
    %v742 = vadd.f32 %v740, %v741
    %v743 = vrot.slane %v742, 2
    %v744 = vadd.f32 %v742, %v743
    %v745 = vrot.slane %v744, 1
    %v746 = vadd.f32 %v744, %v745
    %vm747 = vcmp.eq.s32.totalorder %v57, %v55
    %vm748 = vcmp.eq.s32.totalorder %v58, %v55
    %v749 = vmul.f32 %v89, 100.0
    %v751 = vlaneseq
    %v752 = vshrl.u32 %v751, 7
    %v753 = vsub.s32 0, %v752
    %v754 = vrot.slane %v749, %v753
    %v756 = vsel %vm747, %v754, 0.0
    %v757 = vsel %vm748, %v754, 0.0
    %vm758 = vcmp.eq.s32.totalorder %v57, 8
    %vm759 = vcmp.eq.s32.totalorder %v58, 8
    %v760 = vadd.f32 %v728, %v756
    %v761 = vadd.f32 %v733, %v757
    %v762 = vsel %vm758, 1, 0
    %v763 = vsel %vm759, 1, 0
    %vm764 = vcmp.eq.s32.totalorder %v762, 1
    %vm765 = vcmp.eq.s32.totalorder %v763, 1
    %v766 = vsel %vm764, %v746, %v760
    %v767 = vsel %vm765, %v746, %v761
    %vm768 = vcmp.eq.s32.totalorder %v55, 0
    %v769 = vsel %vm768, 1, 0
    %vm770 = vcmp.eq.s32.totalorder %v769, 1
    %v771 = vsel %vm770, %v766, 0.0
    %v772 = vsel %vm770, %v767, 0.0
    %v773 = vld [vmem:[%s2] sm:$0xff]
    %v774 = vld [vmem:[%s2 + $0x8] sm:$0xff]
    %v775 = vld [vmem:[%s2 + $0x10] sm:$0xff]
    %v776 = vld [vmem:[%s2 + $0x18] sm:$0xff]
    %v777 = vld [vmem:[%s2 + $0x20] sm:$0xff]
    %v778 = vld [vmem:[%s2 + $0x28] sm:$0xff]
    %v779 = vld [vmem:[%s2 + $0x30] sm:$0xff]
    %v780 = vld [vmem:[%s2 + $0x38] sm:$0xff]
    %v781 = vld [vmem:[%s2 + $0x40] sm:$0xff]
    %v782 = vld [vmem:[%s2 + $0x48] sm:$0xff]
    %v783 = vld [vmem:[%s2 + $0x50] sm:$0xff]
    %v784 = vld [vmem:[%s2 + $0x58] sm:$0xff]
    %v785 = vld [vmem:[%s2 + $0x60] sm:$0xff]
    %v786 = vld [vmem:[%s2 + $0x68] sm:$0xff]
    %v787 = vld [vmem:[%s2 + $0x70] sm:$0xff]
    %v788 = vld [vmem:[%s2 + $0x78] sm:$0xff]
    %789 = vmatprep.subr.mxu0 0.0
    %790 = vmatpush1.msra.mxu0 %v773
    %791 = vmatprep.subr.mxu0 0.0
    %792 = vmatpush1.msra.mxu0 %v774
    %793 = vmatprep.subr.mxu0 0.0
    %794 = vmatpush1.msra.mxu0 %v775
    %795 = vmatprep.subr.mxu0 0.0
    %796 = vmatpush1.msra.mxu0 %v776
    %797 = vmatprep.subr.mxu0 0.0
    %798 = vmatpush1.msra.mxu0 %v777
    %799 = vmatprep.subr.mxu0 0.0
    %800 = vmatpush1.msra.mxu0 %v778
    %801 = vmatprep.subr.mxu0 0.0
    %802 = vmatpush1.msra.mxu0 %v779
    %803 = vmatprep.subr.mxu0 0.0
    %804 = vmatpush1.msra.mxu0 %v780
    %805 = vmatprep.subr.mxu0 0.0
    %806 = vmatpush1.msra.mxu0 %v781
    %807 = vmatprep.subr.mxu0 0.0
    %808 = vmatpush1.msra.mxu0 %v782
    %809 = vmatprep.subr.mxu0 0.0
    %810 = vmatpush1.msra.mxu0 %v783
    %811 = vmatprep.subr.mxu0 0.0
    %812 = vmatpush1.msra.mxu0 %v784
    %813 = vmatprep.subr.mxu0 0.0
    %814 = vmatpush1.msra.mxu0 %v785
    %815 = vmatprep.subr.mxu0 0.0
    %816 = vmatpush1.msra.mxu0 %v786
    %817 = vmatprep.subr.mxu0 0.0
    %818 = vmatpush1.msra.mxu0 %v787
    %819 = vmatprep.subr.mxu0 0.0
    %820 = vmatpush1.msra.mxu0 %v788
    %821 = vmatprep.subr.mxu0 0.0
    %822 = vmatpush1.msra.mxu0 0.0
    %823 = vmatprep.subr.mxu0 0.0
    %824 = vmatpush1.msra.mxu0 0.0
    %825 = vmatprep.subr.mxu0 0.0
    %826 = vmatpush1.msra.mxu0 0.0
    %827 = vmatprep.subr.mxu0 0.0
    %828 = vmatpush1.msra.mxu0 0.0
    %829 = vmatprep.subr.mxu0 0.0
    %830 = vmatpush1.msra.mxu0 0.0
    %831 = vmatprep.subr.mxu0 0.0
    %832 = vmatpush1.msra.mxu0 0.0
    %833 = vmatprep.subr.mxu0 0.0
    %834 = vmatpush1.msra.mxu0 0.0
    %835 = vmatprep.subr.mxu0 0.0
    %836 = vmatpush1.msra.mxu0 0.0
    %837 = vmatprep.subr.mxu0 0.0
    %838 = vmatpush1.msra.mxu0 0.0
    %839 = vmatprep.subr.mxu0 0.0
    %840 = vmatpush1.msra.mxu0 0.0
    %841 = vmatprep.subr.mxu0 0.0
    %842 = vmatpush1.msra.mxu0 0.0
    %843 = vmatprep.subr.mxu0 0.0
    %844 = vmatpush1.msra.mxu0 0.0
    %845 = vmatprep.subr.mxu0 0.0
    %846 = vmatpush1.msra.mxu0 0.0
    %847 = vmatprep.subr.mxu0 0.0
    %848 = vmatpush1.msra.mxu0 0.0
    %849 = vmatprep.subr.mxu0 0.0
    %850 = vmatpush1.msra.mxu0 0.0
    %851 = vmatprep.subr.mxu0 0.0
    %852 = vmatpush1.msra.mxu0 0.0
    %853 = vmatprep.mubr.f32.mxu0 0.0
    %854 = vmatmul.mubr.f32.gmra.mrb[0].mxu0 %v771
    %v855 = vpop.f32.mrb[0].mxu0
    %v856 = vadd.f32 0.0, %v855
    %v857 = vpop.f32.mrb[0].mxu0
    %858 = vmatprep.mubr.f32.mxu0 0.0
    %859 = vmatmul.mubr.f32.gmra.mrb[0].mxu0 %v772
    %v860 = vpop.f32.mrb[0].mxu0
    %v861 = vadd.f32 0.0, %v860
    %v862 = vpop.f32.mrb[0].mxu0
    %863 = vdwg.mxu0
    %vm864 = vcmp.eq.s32.totalorder %v57, 0
    %vm865 = vcmp.eq.s32.totalorder %v58, 0
    %v866 = vsel %vm864, 1, 0
    %v867 = vsel %vm865, 1, 0
    %vm868 = vcmp.eq.s32.totalorder %v866, 1
    %vm869 = vcmp.eq.s32.totalorder %v867, 1
    %v870 = vsel %vm868, %v856, 0.0
    %v871 = vsel %vm869, %v861, 0.0
    %v872 = vadd.f32 %v870, %v871
    %v873 = vrot.slane %v872, 4
    %v874 = vadd.f32 %v872, %v873
    %v875 = vrot.slane %v874, 2
    %v876 = vadd.f32 %v874, %v875
    %v877 = vrot.slane %v876, 1
    %v878 = vadd.f32 %v876, %v877
    %v879 = vsel %vm868, %v766, 0.0
    %v880 = vsel %vm869, %v767, 0.0
    %v881 = vadd.f32 %v879, %v880
    %v882 = vrot.slane %v881, 4
    %v883 = vadd.f32 %v881, %v882
    %v884 = vrot.slane %v883, 2
    %v885 = vadd.f32 %v883, %v884
    %v886 = vrot.slane %v885, 1
    %v887 = vadd.f32 %v885, %v886
    %v888 = vand.u32 2147483647, %v878
    %vm889 = vcmp.lt.f32.partialorder %v888, 1e-30
    %v890 = vsel %vm889, 1e-30, %v878
    %v891 = vrcp.pop %v890
    %v892 = vmul.f32 %v890, %v891
    %v893 = vsub.f32 2.0, %v892
    %v894 = vmul.f32 %v891, %v893
    %v895 = vmul.f32 %v856, %v894
    %v896 = vmul.f32 %v861, %v894
    %v897 = vmul.f32 %v887, %v895
    %v898 = vmul.f32 %v887, %v896
    %v899 = vsub.f32 %v766, %v897
    %v900 = vsub.f32 %v767, %v898
    %v901 = vsel %vm770, %v895, %v899
    %v902 = vsel %vm770, %v896, %v900
    %vm903 = vcmp.eq.s32.totalorder %v55, 1
    %v904 = vsel %vm903, 1, 0
    %vm905 = vcmp.eq.s32.totalorder %v904, 1
    %v906 = vsel %vm905, %v901, 0.0
    %v907 = vsel %vm905, %v902, 0.0
    %908 = vmatprep.subr.mxu0 0.0
    %909 = vmatpush1.msra.mxu0 %v773
    %910 = vmatprep.subr.mxu0 0.0
    %911 = vmatpush1.msra.mxu0 %v774
    %912 = vmatprep.subr.mxu0 0.0
    %913 = vmatpush1.msra.mxu0 %v775
    %914 = vmatprep.subr.mxu0 0.0
    %915 = vmatpush1.msra.mxu0 %v776
    %916 = vmatprep.subr.mxu0 0.0
    %917 = vmatpush1.msra.mxu0 %v777
    %918 = vmatprep.subr.mxu0 0.0
    %919 = vmatpush1.msra.mxu0 %v778
    %920 = vmatprep.subr.mxu0 0.0
    %921 = vmatpush1.msra.mxu0 %v779
    %922 = vmatprep.subr.mxu0 0.0
    %923 = vmatpush1.msra.mxu0 %v780
    %924 = vmatprep.subr.mxu0 0.0
    %925 = vmatpush1.msra.mxu0 %v781
    %926 = vmatprep.subr.mxu0 0.0
    %927 = vmatpush1.msra.mxu0 %v782
    %928 = vmatprep.subr.mxu0 0.0
    %929 = vmatpush1.msra.mxu0 %v783
    %930 = vmatprep.subr.mxu0 0.0
    %931 = vmatpush1.msra.mxu0 %v784
    %932 = vmatprep.subr.mxu0 0.0
    %933 = vmatpush1.msra.mxu0 %v785
    %934 = vmatprep.subr.mxu0 0.0
    %935 = vmatpush1.msra.mxu0 %v786
    %936 = vmatprep.subr.mxu0 0.0
    %937 = vmatpush1.msra.mxu0 %v787
    %938 = vmatprep.subr.mxu0 0.0
    %939 = vmatpush1.msra.mxu0 %v788
    %940 = vmatprep.subr.mxu0 0.0
    %941 = vmatpush1.msra.mxu0 0.0
    %942 = vmatprep.subr.mxu0 0.0
    %943 = vmatpush1.msra.mxu0 0.0
    %944 = vmatprep.subr.mxu0 0.0
    %945 = vmatpush1.msra.mxu0 0.0
    %946 = vmatprep.subr.mxu0 0.0
    %947 = vmatpush1.msra.mxu0 0.0
    %948 = vmatprep.subr.mxu0 0.0
    %949 = vmatpush1.msra.mxu0 0.0
    %950 = vmatprep.subr.mxu0 0.0
    %951 = vmatpush1.msra.mxu0 0.0
    %952 = vmatprep.subr.mxu0 0.0
    %953 = vmatpush1.msra.mxu0 0.0
    %954 = vmatprep.subr.mxu0 0.0
    %955 = vmatpush1.msra.mxu0 0.0
    %956 = vmatprep.subr.mxu0 0.0
    %957 = vmatpush1.msra.mxu0 0.0
    %958 = vmatprep.subr.mxu0 0.0
    %959 = vmatpush1.msra.mxu0 0.0
    %960 = vmatprep.subr.mxu0 0.0
    %961 = vmatpush1.msra.mxu0 0.0
    %962 = vmatprep.subr.mxu0 0.0
    %963 = vmatpush1.msra.mxu0 0.0
    %964 = vmatprep.subr.mxu0 0.0
    %965 = vmatpush1.msra.mxu0 0.0
    %966 = vmatprep.subr.mxu0 0.0
    %967 = vmatpush1.msra.mxu0 0.0
    %968 = vmatprep.subr.mxu0 0.0
    %969 = vmatpush1.msra.mxu0 0.0
    %970 = vmatprep.subr.mxu0 0.0
    %971 = vmatpush1.msra.mxu0 0.0
    %972 = vmatprep.mubr.f32.mxu0 0.0
    %973 = vmatmul.mubr.f32.gmra.mrb[0].mxu0 %v906
    %v974 = vpop.f32.mrb[0].mxu0
    %v975 = vadd.f32 0.0, %v974
    %v976 = vpop.f32.mrb[0].mxu0
    %977 = vmatprep.mubr.f32.mxu0 0.0
    %978 = vmatmul.mubr.f32.gmra.mrb[0].mxu0 %v907
    %v979 = vpop.f32.mrb[0].mxu0
    %v980 = vadd.f32 0.0, %v979
    %v981 = vpop.f32.mrb[0].mxu0
    %982 = vdwg.mxu0
    %vm983 = vcmp.eq.s32.totalorder %v57, 1
    %vm984 = vcmp.eq.s32.totalorder %v58, 1
    %v985 = vsel %vm983, 1, 0
    %v986 = vsel %vm984, 1, 0
    %vm987 = vcmp.eq.s32.totalorder %v985, 1
    %vm988 = vcmp.eq.s32.totalorder %v986, 1
    %v989 = vsel %vm987, %v975, 0.0
    %v990 = vsel %vm988, %v980, 0.0
    %v991 = vadd.f32 %v989, %v990
    %v992 = vrot.slane %v991, 4
    %v993 = vadd.f32 %v991, %v992
    %v994 = vrot.slane %v993, 2
    %v995 = vadd.f32 %v993, %v994
    %v996 = vrot.slane %v995, 1
    %v997 = vadd.f32 %v995, %v996
    %v998 = vsel %vm987, %v901, 0.0
    %v999 = vsel %vm988, %v902, 0.0
    %v1000 = vadd.f32 %v998, %v999
    %v1001 = vrot.slane %v1000, 4
    %v1002 = vadd.f32 %v1000, %v1001
    %v1003 = vrot.slane %v1002, 2
    %v1004 = vadd.f32 %v1002, %v1003
    %v1005 = vrot.slane %v1004, 1
    %v1006 = vadd.f32 %v1004, %v1005
    %v1007 = vand.u32 2147483647, %v997
    %vm1008 = vcmp.lt.f32.partialorder %v1007, 1e-30
    %v1009 = vsel %vm1008, 1e-30, %v997
    %v1010 = vrcp.pop %v1009
    %v1011 = vmul.f32 %v1009, %v1010
    %v1012 = vsub.f32 2.0, %v1011
    %v1013 = vmul.f32 %v1010, %v1012
    %v1014 = vmul.f32 %v975, %v1013
    %v1015 = vmul.f32 %v980, %v1013
    %v1016 = vmul.f32 %v1006, %v1014
    %v1017 = vmul.f32 %v1006, %v1015
    %v1018 = vsub.f32 %v901, %v1016
    %v1019 = vsub.f32 %v902, %v1017
    %v1020 = vsel %vm905, %v1014, %v1018
    %v1021 = vsel %vm905, %v1015, %v1019
    %vm1022 = vcmp.eq.s32.totalorder %v55, 2
    %v1023 = vsel %vm1022, 1, 0
    %vm1024 = vcmp.eq.s32.totalorder %v1023, 1
    %v1025 = vsel %vm1024, %v1020, 0.0
    %v1026 = vsel %vm1024, %v1021, 0.0
    %1027 = vmatprep.subr.mxu0 0.0
    %1028 = vmatpush1.msra.mxu0 %v773
    %1029 = vmatprep.subr.mxu0 0.0
    %1030 = vmatpush1.msra.mxu0 %v774
    %1031 = vmatprep.subr.mxu0 0.0
    %1032 = vmatpush1.msra.mxu0 %v775
    %1033 = vmatprep.subr.mxu0 0.0
    %1034 = vmatpush1.msra.mxu0 %v776
    %1035 = vmatprep.subr.mxu0 0.0
    %1036 = vmatpush1.msra.mxu0 %v777
    %1037 = vmatprep.subr.mxu0 0.0
    %1038 = vmatpush1.msra.mxu0 %v778
    %1039 = vmatprep.subr.mxu0 0.0
    %1040 = vmatpush1.msra.mxu0 %v779
    %1041 = vmatprep.subr.mxu0 0.0
    %1042 = vmatpush1.msra.mxu0 %v780
    %1043 = vmatprep.subr.mxu0 0.0
    %1044 = vmatpush1.msra.mxu0 %v781
    %1045 = vmatprep.subr.mxu0 0.0
    %1046 = vmatpush1.msra.mxu0 %v782
    %1047 = vmatprep.subr.mxu0 0.0
    %1048 = vmatpush1.msra.mxu0 %v783
    %1049 = vmatprep.subr.mxu0 0.0
    %1050 = vmatpush1.msra.mxu0 %v784
    %1051 = vmatprep.subr.mxu0 0.0
    %1052 = vmatpush1.msra.mxu0 %v785
    %1053 = vmatprep.subr.mxu0 0.0
    %1054 = vmatpush1.msra.mxu0 %v786
    %1055 = vmatprep.subr.mxu0 0.0
    %1056 = vmatpush1.msra.mxu0 %v787
    %1057 = vmatprep.subr.mxu0 0.0
    %1058 = vmatpush1.msra.mxu0 %v788
    %1059 = vmatprep.subr.mxu0 0.0
    %1060 = vmatpush1.msra.mxu0 0.0
    %1061 = vmatprep.subr.mxu0 0.0
    %1062 = vmatpush1.msra.mxu0 0.0
    %1063 = vmatprep.subr.mxu0 0.0
    %1064 = vmatpush1.msra.mxu0 0.0
    %1065 = vmatprep.subr.mxu0 0.0
    %1066 = vmatpush1.msra.mxu0 0.0
    %1067 = vmatprep.subr.mxu0 0.0
    %1068 = vmatpush1.msra.mxu0 0.0
    %1069 = vmatprep.subr.mxu0 0.0
    %1070 = vmatpush1.msra.mxu0 0.0
    %1071 = vmatprep.subr.mxu0 0.0
    %1072 = vmatpush1.msra.mxu0 0.0
    %1073 = vmatprep.subr.mxu0 0.0
    %1074 = vmatpush1.msra.mxu0 0.0
    %1075 = vmatprep.subr.mxu0 0.0
    %1076 = vmatpush1.msra.mxu0 0.0
    %1077 = vmatprep.subr.mxu0 0.0
    %1078 = vmatpush1.msra.mxu0 0.0
    %1079 = vmatprep.subr.mxu0 0.0
    %1080 = vmatpush1.msra.mxu0 0.0
    %1081 = vmatprep.subr.mxu0 0.0
    %1082 = vmatpush1.msra.mxu0 0.0
    %1083 = vmatprep.subr.mxu0 0.0
    %1084 = vmatpush1.msra.mxu0 0.0
    %1085 = vmatprep.subr.mxu0 0.0
    %1086 = vmatpush1.msra.mxu0 0.0
    %1087 = vmatprep.subr.mxu0 0.0
    %1088 = vmatpush1.msra.mxu0 0.0
    %1089 = vmatprep.subr.mxu0 0.0
    %1090 = vmatpush1.msra.mxu0 0.0
    %1091 = vmatprep.mubr.f32.mxu0 0.0
    %1092 = vmatmul.mubr.f32.gmra.mrb[0].mxu0 %v1025
    %v1093 = vpop.f32.mrb[0].mxu0
    %v1094 = vadd.f32 0.0, %v1093
    %v1095 = vpop.f32.mrb[0].mxu0
    %1096 = vmatprep.mubr.f32.mxu0 0.0
    %1097 = vmatmul.mubr.f32.gmra.mrb[0].mxu0 %v1026
    %v1098 = vpop.f32.mrb[0].mxu0
    %v1099 = vadd.f32 0.0, %v1098
    %v1100 = vpop.f32.mrb[0].mxu0
    %1101 = vdwg.mxu0
    %vm1102 = vcmp.eq.s32.totalorder %v57, 2
    %vm1103 = vcmp.eq.s32.totalorder %v58, 2
    %v1104 = vsel %vm1102, 1, 0
    %v1105 = vsel %vm1103, 1, 0
    %vm1106 = vcmp.eq.s32.totalorder %v1104, 1
    %vm1107 = vcmp.eq.s32.totalorder %v1105, 1
    %v1108 = vsel %vm1106, %v1094, 0.0
    %v1109 = vsel %vm1107, %v1099, 0.0
    %v1110 = vadd.f32 %v1108, %v1109
    %v1111 = vrot.slane %v1110, 4
    %v1112 = vadd.f32 %v1110, %v1111
    %v1113 = vrot.slane %v1112, 2
    %v1114 = vadd.f32 %v1112, %v1113
    %v1115 = vrot.slane %v1114, 1
    %v1116 = vadd.f32 %v1114, %v1115
    %v1117 = vsel %vm1106, %v1020, 0.0
    %v1118 = vsel %vm1107, %v1021, 0.0
    %v1119 = vadd.f32 %v1117, %v1118
    %v1120 = vrot.slane %v1119, 4
    %v1121 = vadd.f32 %v1119, %v1120
    %v1122 = vrot.slane %v1121, 2
    %v1123 = vadd.f32 %v1121, %v1122
    %v1124 = vrot.slane %v1123, 1
    %v1125 = vadd.f32 %v1123, %v1124
    %v1126 = vand.u32 2147483647, %v1116
    %vm1127 = vcmp.lt.f32.partialorder %v1126, 1e-30
    %v1128 = vsel %vm1127, 1e-30, %v1116
    %v1129 = vrcp.pop %v1128
    %v1130 = vmul.f32 %v1128, %v1129
    %v1131 = vsub.f32 2.0, %v1130
    %v1132 = vmul.f32 %v1129, %v1131
    %v1133 = vmul.f32 %v1094, %v1132
    %v1134 = vmul.f32 %v1099, %v1132
    %v1135 = vmul.f32 %v1125, %v1133
    %v1136 = vmul.f32 %v1125, %v1134
    %v1137 = vsub.f32 %v1020, %v1135
    %v1138 = vsub.f32 %v1021, %v1136
    %v1139 = vsel %vm1024, %v1133, %v1137
    %v1140 = vsel %vm1024, %v1134, %v1138
    %vm1141 = vcmp.eq.s32.totalorder %v55, 3
    %v1142 = vsel %vm1141, 1, 0
    %vm1143 = vcmp.eq.s32.totalorder %v1142, 1
    %v1144 = vsel %vm1143, %v1139, 0.0
    %v1145 = vsel %vm1143, %v1140, 0.0
    %1146 = vmatprep.subr.mxu0 0.0
    %1147 = vmatpush1.msra.mxu0 %v773
    %1148 = vmatprep.subr.mxu0 0.0
    %1149 = vmatpush1.msra.mxu0 %v774
    %1150 = vmatprep.subr.mxu0 0.0
    %1151 = vmatpush1.msra.mxu0 %v775
    %1152 = vmatprep.subr.mxu0 0.0
    %1153 = vmatpush1.msra.mxu0 %v776
    %1154 = vmatprep.subr.mxu0 0.0
    %1155 = vmatpush1.msra.mxu0 %v777
    %1156 = vmatprep.subr.mxu0 0.0
    %1157 = vmatpush1.msra.mxu0 %v778
    %1158 = vmatprep.subr.mxu0 0.0
    %1159 = vmatpush1.msra.mxu0 %v779
    %1160 = vmatprep.subr.mxu0 0.0
    %1161 = vmatpush1.msra.mxu0 %v780
    %1162 = vmatprep.subr.mxu0 0.0
    %1163 = vmatpush1.msra.mxu0 %v781
    %1164 = vmatprep.subr.mxu0 0.0
    %1165 = vmatpush1.msra.mxu0 %v782
    %1166 = vmatprep.subr.mxu0 0.0
    %1167 = vmatpush1.msra.mxu0 %v783
    %1168 = vmatprep.subr.mxu0 0.0
    %1169 = vmatpush1.msra.mxu0 %v784
    %1170 = vmatprep.subr.mxu0 0.0
    %1171 = vmatpush1.msra.mxu0 %v785
    %1172 = vmatprep.subr.mxu0 0.0
    %1173 = vmatpush1.msra.mxu0 %v786
    %1174 = vmatprep.subr.mxu0 0.0
    %1175 = vmatpush1.msra.mxu0 %v787
    %1176 = vmatprep.subr.mxu0 0.0
    %1177 = vmatpush1.msra.mxu0 %v788
    %1178 = vmatprep.subr.mxu0 0.0
    %1179 = vmatpush1.msra.mxu0 0.0
    %1180 = vmatprep.subr.mxu0 0.0
    %1181 = vmatpush1.msra.mxu0 0.0
    %1182 = vmatprep.subr.mxu0 0.0
    %1183 = vmatpush1.msra.mxu0 0.0
    %1184 = vmatprep.subr.mxu0 0.0
    %1185 = vmatpush1.msra.mxu0 0.0
    %1186 = vmatprep.subr.mxu0 0.0
    %1187 = vmatpush1.msra.mxu0 0.0
    %1188 = vmatprep.subr.mxu0 0.0
    %1189 = vmatpush1.msra.mxu0 0.0
    %1190 = vmatprep.subr.mxu0 0.0
    %1191 = vmatpush1.msra.mxu0 0.0
    %1192 = vmatprep.subr.mxu0 0.0
    %1193 = vmatpush1.msra.mxu0 0.0
    %1194 = vmatprep.subr.mxu0 0.0
    %1195 = vmatpush1.msra.mxu0 0.0
    %1196 = vmatprep.subr.mxu0 0.0
    %1197 = vmatpush1.msra.mxu0 0.0
    %1198 = vmatprep.subr.mxu0 0.0
    %1199 = vmatpush1.msra.mxu0 0.0
    %1200 = vmatprep.subr.mxu0 0.0
    %1201 = vmatpush1.msra.mxu0 0.0
    %1202 = vmatprep.subr.mxu0 0.0
    %1203 = vmatpush1.msra.mxu0 0.0
    %1204 = vmatprep.subr.mxu0 0.0
    %1205 = vmatpush1.msra.mxu0 0.0
    %1206 = vmatprep.subr.mxu0 0.0
    %1207 = vmatpush1.msra.mxu0 0.0
    %1208 = vmatprep.subr.mxu0 0.0
    %1209 = vmatpush1.msra.mxu0 0.0
    %1210 = vmatprep.mubr.f32.mxu0 0.0
    %1211 = vmatmul.mubr.f32.gmra.mrb[0].mxu0 %v1144
    %v1212 = vpop.f32.mrb[0].mxu0
    %v1213 = vadd.f32 0.0, %v1212
    %v1214 = vpop.f32.mrb[0].mxu0
    %1215 = vmatprep.mubr.f32.mxu0 0.0
    %1216 = vmatmul.mubr.f32.gmra.mrb[0].mxu0 %v1145
    %v1217 = vpop.f32.mrb[0].mxu0
    %v1218 = vadd.f32 0.0, %v1217
    %v1219 = vpop.f32.mrb[0].mxu0
    %1220 = vdwg.mxu0
    %vm1221 = vcmp.eq.s32.totalorder %v57, 3
    %vm1222 = vcmp.eq.s32.totalorder %v58, 3
    %v1223 = vsel %vm1221, 1, 0
    %v1224 = vsel %vm1222, 1, 0
    %vm1225 = vcmp.eq.s32.totalorder %v1223, 1
    %vm1226 = vcmp.eq.s32.totalorder %v1224, 1
    %v1227 = vsel %vm1225, %v1213, 0.0
    %v1228 = vsel %vm1226, %v1218, 0.0
    %v1229 = vadd.f32 %v1227, %v1228
    %v1230 = vrot.slane %v1229, 4
    %v1231 = vadd.f32 %v1229, %v1230
    %v1232 = vrot.slane %v1231, 2
    %v1233 = vadd.f32 %v1231, %v1232
    %v1234 = vrot.slane %v1233, 1
    %v1235 = vadd.f32 %v1233, %v1234
    %v1236 = vsel %vm1225, %v1139, 0.0
    %v1237 = vsel %vm1226, %v1140, 0.0
    %v1238 = vadd.f32 %v1236, %v1237
    %v1239 = vrot.slane %v1238, 4
    %v1240 = vadd.f32 %v1238, %v1239
    %v1241 = vrot.slane %v1240, 2
    %v1242 = vadd.f32 %v1240, %v1241
    %v1243 = vrot.slane %v1242, 1
    %v1244 = vadd.f32 %v1242, %v1243
    %v1245 = vand.u32 2147483647, %v1235
    %vm1246 = vcmp.lt.f32.partialorder %v1245, 1e-30
    %v1247 = vsel %vm1246, 1e-30, %v1235
    %v1248 = vrcp.pop %v1247
    %v1249 = vmul.f32 %v1247, %v1248
    %v1250 = vsub.f32 2.0, %v1249
    %v1251 = vmul.f32 %v1248, %v1250
    %v1252 = vmul.f32 %v1213, %v1251
    %v1253 = vmul.f32 %v1218, %v1251
    %v1254 = vmul.f32 %v1244, %v1252
    %v1255 = vmul.f32 %v1244, %v1253
    %v1256 = vsub.f32 %v1139, %v1254
    %v1257 = vsub.f32 %v1140, %v1255
    %v1258 = vsel %vm1143, %v1252, %v1256
    %v1259 = vsel %vm1143, %v1253, %v1257
    %vm1260 = vcmp.eq.s32.totalorder %v55, 4
    %v1261 = vsel %vm1260, 1, 0
    %vm1262 = vcmp.eq.s32.totalorder %v1261, 1
    %v1263 = vsel %vm1262, %v1258, 0.0
    %v1264 = vsel %vm1262, %v1259, 0.0
    %1265 = vmatprep.subr.mxu0 0.0
    %1266 = vmatpush1.msra.mxu0 %v773
    %1267 = vmatprep.subr.mxu0 0.0
    %1268 = vmatpush1.msra.mxu0 %v774
    %1269 = vmatprep.subr.mxu0 0.0
    %1270 = vmatpush1.msra.mxu0 %v775
    %1271 = vmatprep.subr.mxu0 0.0
    %1272 = vmatpush1.msra.mxu0 %v776
    %1273 = vmatprep.subr.mxu0 0.0
    %1274 = vmatpush1.msra.mxu0 %v777
    %1275 = vmatprep.subr.mxu0 0.0
    %1276 = vmatpush1.msra.mxu0 %v778
    %1277 = vmatprep.subr.mxu0 0.0
    %1278 = vmatpush1.msra.mxu0 %v779
    %1279 = vmatprep.subr.mxu0 0.0
    %1280 = vmatpush1.msra.mxu0 %v780
    %1281 = vmatprep.subr.mxu0 0.0
    %1282 = vmatpush1.msra.mxu0 %v781
    %1283 = vmatprep.subr.mxu0 0.0
    %1284 = vmatpush1.msra.mxu0 %v782
    %1285 = vmatprep.subr.mxu0 0.0
    %1286 = vmatpush1.msra.mxu0 %v783
    %1287 = vmatprep.subr.mxu0 0.0
    %1288 = vmatpush1.msra.mxu0 %v784
    %1289 = vmatprep.subr.mxu0 0.0
    %1290 = vmatpush1.msra.mxu0 %v785
    %1291 = vmatprep.subr.mxu0 0.0
    %1292 = vmatpush1.msra.mxu0 %v786
    %1293 = vmatprep.subr.mxu0 0.0
    %1294 = vmatpush1.msra.mxu0 %v787
    %1295 = vmatprep.subr.mxu0 0.0
    %1296 = vmatpush1.msra.mxu0 %v788
    %1297 = vmatprep.subr.mxu0 0.0
    %1298 = vmatpush1.msra.mxu0 0.0
    %1299 = vmatprep.subr.mxu0 0.0
    %1300 = vmatpush1.msra.mxu0 0.0
    %1301 = vmatprep.subr.mxu0 0.0
    %1302 = vmatpush1.msra.mxu0 0.0
    %1303 = vmatprep.subr.mxu0 0.0
    %1304 = vmatpush1.msra.mxu0 0.0
    %1305 = vmatprep.subr.mxu0 0.0
    %1306 = vmatpush1.msra.mxu0 0.0
    %1307 = vmatprep.subr.mxu0 0.0
    %1308 = vmatpush1.msra.mxu0 0.0
    %1309 = vmatprep.subr.mxu0 0.0
    %1310 = vmatpush1.msra.mxu0 0.0
    %1311 = vmatprep.subr.mxu0 0.0
    %1312 = vmatpush1.msra.mxu0 0.0
    %1313 = vmatprep.subr.mxu0 0.0
    %1314 = vmatpush1.msra.mxu0 0.0
    %1315 = vmatprep.subr.mxu0 0.0
    %1316 = vmatpush1.msra.mxu0 0.0
    %1317 = vmatprep.subr.mxu0 0.0
    %1318 = vmatpush1.msra.mxu0 0.0
    %1319 = vmatprep.subr.mxu0 0.0
    %1320 = vmatpush1.msra.mxu0 0.0
    %1321 = vmatprep.subr.mxu0 0.0
    %1322 = vmatpush1.msra.mxu0 0.0
    %1323 = vmatprep.subr.mxu0 0.0
    %1324 = vmatpush1.msra.mxu0 0.0
    %1325 = vmatprep.subr.mxu0 0.0
    %1326 = vmatpush1.msra.mxu0 0.0
    %1327 = vmatprep.subr.mxu0 0.0
    %1328 = vmatpush1.msra.mxu0 0.0
    %1329 = vmatprep.mubr.f32.mxu0 0.0
    %1330 = vmatmul.mubr.f32.gmra.mrb[0].mxu0 %v1263
    %v1331 = vpop.f32.mrb[0].mxu0
    %v1332 = vadd.f32 0.0, %v1331
    %v1333 = vpop.f32.mrb[0].mxu0
    %1334 = vmatprep.mubr.f32.mxu0 0.0
    %1335 = vmatmul.mubr.f32.gmra.mrb[0].mxu0 %v1264
    %v1336 = vpop.f32.mrb[0].mxu0
    %v1337 = vadd.f32 0.0, %v1336
    %v1338 = vpop.f32.mrb[0].mxu0
    %1339 = vdwg.mxu0
    %vm1340 = vcmp.eq.s32.totalorder %v57, 4
    %vm1341 = vcmp.eq.s32.totalorder %v58, 4
    %v1342 = vsel %vm1340, 1, 0
    %v1343 = vsel %vm1341, 1, 0
    %vm1344 = vcmp.eq.s32.totalorder %v1342, 1
    %vm1345 = vcmp.eq.s32.totalorder %v1343, 1
    %v1346 = vsel %vm1344, %v1332, 0.0
    %v1347 = vsel %vm1345, %v1337, 0.0
    %v1348 = vadd.f32 %v1346, %v1347
    %v1349 = vrot.slane %v1348, 4
    %v1350 = vadd.f32 %v1348, %v1349
    %v1351 = vrot.slane %v1350, 2
    %v1352 = vadd.f32 %v1350, %v1351
    %v1353 = vrot.slane %v1352, 1
    %v1354 = vadd.f32 %v1352, %v1353
    %v1355 = vsel %vm1344, %v1258, 0.0
    %v1356 = vsel %vm1345, %v1259, 0.0
    %v1357 = vadd.f32 %v1355, %v1356
    %v1358 = vrot.slane %v1357, 4
    %v1359 = vadd.f32 %v1357, %v1358
    %v1360 = vrot.slane %v1359, 2
    %v1361 = vadd.f32 %v1359, %v1360
    %v1362 = vrot.slane %v1361, 1
    %v1363 = vadd.f32 %v1361, %v1362
    %v1364 = vand.u32 2147483647, %v1354
    %vm1365 = vcmp.lt.f32.partialorder %v1364, 1e-30
    %v1366 = vsel %vm1365, 1e-30, %v1354
    %v1367 = vrcp.pop %v1366
    %v1368 = vmul.f32 %v1366, %v1367
    %v1369 = vsub.f32 2.0, %v1368
    %v1370 = vmul.f32 %v1367, %v1369
    %v1371 = vmul.f32 %v1332, %v1370
    %v1372 = vmul.f32 %v1337, %v1370
    %v1373 = vmul.f32 %v1363, %v1371
    %v1374 = vmul.f32 %v1363, %v1372
    %v1375 = vsub.f32 %v1258, %v1373
    %v1376 = vsub.f32 %v1259, %v1374
    %v1377 = vsel %vm1262, %v1371, %v1375
    %v1378 = vsel %vm1262, %v1372, %v1376
    %vm1379 = vcmp.eq.s32.totalorder %v55, 5
    %v1380 = vsel %vm1379, 1, 0
    %vm1381 = vcmp.eq.s32.totalorder %v1380, 1
    %v1382 = vsel %vm1381, %v1377, 0.0
    %v1383 = vsel %vm1381, %v1378, 0.0
    %1384 = vmatprep.subr.mxu0 0.0
    %1385 = vmatpush1.msra.mxu0 %v773
    %1386 = vmatprep.subr.mxu0 0.0
    %1387 = vmatpush1.msra.mxu0 %v774
    %1388 = vmatprep.subr.mxu0 0.0
    %1389 = vmatpush1.msra.mxu0 %v775
    %1390 = vmatprep.subr.mxu0 0.0
    %1391 = vmatpush1.msra.mxu0 %v776
    %1392 = vmatprep.subr.mxu0 0.0
    %1393 = vmatpush1.msra.mxu0 %v777
    %1394 = vmatprep.subr.mxu0 0.0
    %1395 = vmatpush1.msra.mxu0 %v778
    %1396 = vmatprep.subr.mxu0 0.0
    %1397 = vmatpush1.msra.mxu0 %v779
    %1398 = vmatprep.subr.mxu0 0.0
    %1399 = vmatpush1.msra.mxu0 %v780
    %1400 = vmatprep.subr.mxu0 0.0
    %1401 = vmatpush1.msra.mxu0 %v781
    %1402 = vmatprep.subr.mxu0 0.0
    %1403 = vmatpush1.msra.mxu0 %v782
    %1404 = vmatprep.subr.mxu0 0.0
    %1405 = vmatpush1.msra.mxu0 %v783
    %1406 = vmatprep.subr.mxu0 0.0
    %1407 = vmatpush1.msra.mxu0 %v784
    %1408 = vmatprep.subr.mxu0 0.0
    %1409 = vmatpush1.msra.mxu0 %v785
    %1410 = vmatprep.subr.mxu0 0.0
    %1411 = vmatpush1.msra.mxu0 %v786
    %1412 = vmatprep.subr.mxu0 0.0
    %1413 = vmatpush1.msra.mxu0 %v787
    %1414 = vmatprep.subr.mxu0 0.0
    %1415 = vmatpush1.msra.mxu0 %v788
    %1416 = vmatprep.subr.mxu0 0.0
    %1417 = vmatpush1.msra.mxu0 0.0
    %1418 = vmatprep.subr.mxu0 0.0
    %1419 = vmatpush1.msra.mxu0 0.0
    %1420 = vmatprep.subr.mxu0 0.0
    %1421 = vmatpush1.msra.mxu0 0.0
    %1422 = vmatprep.subr.mxu0 0.0
    %1423 = vmatpush1.msra.mxu0 0.0
    %1424 = vmatprep.subr.mxu0 0.0
    %1425 = vmatpush1.msra.mxu0 0.0
    %1426 = vmatprep.subr.mxu0 0.0
    %1427 = vmatpush1.msra.mxu0 0.0
    %1428 = vmatprep.subr.mxu0 0.0
    %1429 = vmatpush1.msra.mxu0 0.0
    %1430 = vmatprep.subr.mxu0 0.0
    %1431 = vmatpush1.msra.mxu0 0.0
    %1432 = vmatprep.subr.mxu0 0.0
    %1433 = vmatpush1.msra.mxu0 0.0
    %1434 = vmatprep.subr.mxu0 0.0
    %1435 = vmatpush1.msra.mxu0 0.0
    %1436 = vmatprep.subr.mxu0 0.0
    %1437 = vmatpush1.msra.mxu0 0.0
    %1438 = vmatprep.subr.mxu0 0.0
    %1439 = vmatpush1.msra.mxu0 0.0
    %1440 = vmatprep.subr.mxu0 0.0
    %1441 = vmatpush1.msra.mxu0 0.0
    %1442 = vmatprep.subr.mxu0 0.0
    %1443 = vmatpush1.msra.mxu0 0.0
    %1444 = vmatprep.subr.mxu0 0.0
    %1445 = vmatpush1.msra.mxu0 0.0
    %1446 = vmatprep.subr.mxu0 0.0
    %1447 = vmatpush1.msra.mxu0 0.0
    %1448 = vmatprep.mubr.f32.mxu0 0.0
    %1449 = vmatmul.mubr.f32.gmra.mrb[0].mxu0 %v1382
    %v1450 = vpop.f32.mrb[0].mxu0
    %v1451 = vadd.f32 0.0, %v1450
    %v1452 = vpop.f32.mrb[0].mxu0
    %1453 = vmatprep.mubr.f32.mxu0 0.0
    %1454 = vmatmul.mubr.f32.gmra.mrb[0].mxu0 %v1383
    %v1455 = vpop.f32.mrb[0].mxu0
    %v1456 = vadd.f32 0.0, %v1455
    %v1457 = vpop.f32.mrb[0].mxu0
    %1458 = vdwg.mxu0
    %vm1459 = vcmp.eq.s32.totalorder %v57, 5
    %vm1460 = vcmp.eq.s32.totalorder %v58, 5
    %v1461 = vsel %vm1459, 1, 0
    %v1462 = vsel %vm1460, 1, 0
    %vm1463 = vcmp.eq.s32.totalorder %v1461, 1
    %vm1464 = vcmp.eq.s32.totalorder %v1462, 1
    %v1465 = vsel %vm1463, %v1451, 0.0
    %v1466 = vsel %vm1464, %v1456, 0.0
    %v1467 = vadd.f32 %v1465, %v1466
    %v1468 = vrot.slane %v1467, 4
    %v1469 = vadd.f32 %v1467, %v1468
    %v1470 = vrot.slane %v1469, 2
    %v1471 = vadd.f32 %v1469, %v1470
    %v1472 = vrot.slane %v1471, 1
    %v1473 = vadd.f32 %v1471, %v1472
    %v1474 = vsel %vm1463, %v1377, 0.0
    %v1475 = vsel %vm1464, %v1378, 0.0
    %v1476 = vadd.f32 %v1474, %v1475
    %v1477 = vrot.slane %v1476, 4
    %v1478 = vadd.f32 %v1476, %v1477
    %v1479 = vrot.slane %v1478, 2
    %v1480 = vadd.f32 %v1478, %v1479
    %v1481 = vrot.slane %v1480, 1
    %v1482 = vadd.f32 %v1480, %v1481
    %v1483 = vand.u32 2147483647, %v1473
    %vm1484 = vcmp.lt.f32.partialorder %v1483, 1e-30
    %v1485 = vsel %vm1484, 1e-30, %v1473
    %v1486 = vrcp.pop %v1485
    %v1487 = vmul.f32 %v1485, %v1486
    %v1488 = vsub.f32 2.0, %v1487
    %v1489 = vmul.f32 %v1486, %v1488
    %v1490 = vmul.f32 %v1451, %v1489
    %v1491 = vmul.f32 %v1456, %v1489
    %v1492 = vmul.f32 %v1482, %v1490
    %v1493 = vmul.f32 %v1482, %v1491
    %v1494 = vsub.f32 %v1377, %v1492
    %v1495 = vsub.f32 %v1378, %v1493
    %v1496 = vsel %vm1381, %v1490, %v1494
    %v1497 = vsel %vm1381, %v1491, %v1495
    %vm1498 = vcmp.eq.s32.totalorder %v55, 6
    %v1499 = vsel %vm1498, 1, 0
    %vm1500 = vcmp.eq.s32.totalorder %v1499, 1
    %v1501 = vsel %vm1500, %v1496, 0.0
    %v1502 = vsel %vm1500, %v1497, 0.0
    %1503 = vmatprep.subr.mxu0 0.0
    %1504 = vmatpush1.msra.mxu0 %v773
    %1505 = vmatprep.subr.mxu0 0.0
    %1506 = vmatpush1.msra.mxu0 %v774
    %1507 = vmatprep.subr.mxu0 0.0
    %1508 = vmatpush1.msra.mxu0 %v775
    %1509 = vmatprep.subr.mxu0 0.0
    %1510 = vmatpush1.msra.mxu0 %v776
    %1511 = vmatprep.subr.mxu0 0.0
    %1512 = vmatpush1.msra.mxu0 %v777
    %1513 = vmatprep.subr.mxu0 0.0
    %1514 = vmatpush1.msra.mxu0 %v778
    %1515 = vmatprep.subr.mxu0 0.0
    %1516 = vmatpush1.msra.mxu0 %v779
    %1517 = vmatprep.subr.mxu0 0.0
    %1518 = vmatpush1.msra.mxu0 %v780
    %1519 = vmatprep.subr.mxu0 0.0
    %1520 = vmatpush1.msra.mxu0 %v781
    %1521 = vmatprep.subr.mxu0 0.0
    %1522 = vmatpush1.msra.mxu0 %v782
    %1523 = vmatprep.subr.mxu0 0.0
    %1524 = vmatpush1.msra.mxu0 %v783
    %1525 = vmatprep.subr.mxu0 0.0
    %1526 = vmatpush1.msra.mxu0 %v784
    %1527 = vmatprep.subr.mxu0 0.0
    %1528 = vmatpush1.msra.mxu0 %v785
    %1529 = vmatprep.subr.mxu0 0.0
    %1530 = vmatpush1.msra.mxu0 %v786
    %1531 = vmatprep.subr.mxu0 0.0
    %1532 = vmatpush1.msra.mxu0 %v787
    %1533 = vmatprep.subr.mxu0 0.0
    %1534 = vmatpush1.msra.mxu0 %v788
    %1535 = vmatprep.subr.mxu0 0.0
    %1536 = vmatpush1.msra.mxu0 0.0
    %1537 = vmatprep.subr.mxu0 0.0
    %1538 = vmatpush1.msra.mxu0 0.0
    %1539 = vmatprep.subr.mxu0 0.0
    %1540 = vmatpush1.msra.mxu0 0.0
    %1541 = vmatprep.subr.mxu0 0.0
    %1542 = vmatpush1.msra.mxu0 0.0
    %1543 = vmatprep.subr.mxu0 0.0
    %1544 = vmatpush1.msra.mxu0 0.0
    %1545 = vmatprep.subr.mxu0 0.0
    %1546 = vmatpush1.msra.mxu0 0.0
    %1547 = vmatprep.subr.mxu0 0.0
    %1548 = vmatpush1.msra.mxu0 0.0
    %1549 = vmatprep.subr.mxu0 0.0
    %1550 = vmatpush1.msra.mxu0 0.0
    %1551 = vmatprep.subr.mxu0 0.0
    %1552 = vmatpush1.msra.mxu0 0.0
    %1553 = vmatprep.subr.mxu0 0.0
    %1554 = vmatpush1.msra.mxu0 0.0
    %1555 = vmatprep.subr.mxu0 0.0
    %1556 = vmatpush1.msra.mxu0 0.0
    %1557 = vmatprep.subr.mxu0 0.0
    %1558 = vmatpush1.msra.mxu0 0.0
    %1559 = vmatprep.subr.mxu0 0.0
    %1560 = vmatpush1.msra.mxu0 0.0
    %1561 = vmatprep.subr.mxu0 0.0
    %1562 = vmatpush1.msra.mxu0 0.0
    %1563 = vmatprep.subr.mxu0 0.0
    %1564 = vmatpush1.msra.mxu0 0.0
    %1565 = vmatprep.subr.mxu0 0.0
    %1566 = vmatpush1.msra.mxu0 0.0
    %1567 = vmatprep.mubr.f32.mxu0 0.0
    %1568 = vmatmul.mubr.f32.gmra.mrb[0].mxu0 %v1501
    %v1569 = vpop.f32.mrb[0].mxu0
    %v1570 = vadd.f32 0.0, %v1569
    %v1571 = vpop.f32.mrb[0].mxu0
    %1572 = vmatprep.mubr.f32.mxu0 0.0
    %1573 = vmatmul.mubr.f32.gmra.mrb[0].mxu0 %v1502
    %v1574 = vpop.f32.mrb[0].mxu0
    %v1575 = vadd.f32 0.0, %v1574
    %v1576 = vpop.f32.mrb[0].mxu0
    %1577 = vdwg.mxu0
    %vm1578 = vcmp.eq.s32.totalorder %v57, 6
    %vm1579 = vcmp.eq.s32.totalorder %v58, 6
    %v1580 = vsel %vm1578, 1, 0
    %v1581 = vsel %vm1579, 1, 0
    %vm1582 = vcmp.eq.s32.totalorder %v1580, 1
    %vm1583 = vcmp.eq.s32.totalorder %v1581, 1
    %v1584 = vsel %vm1582, %v1570, 0.0
    %v1585 = vsel %vm1583, %v1575, 0.0
    %v1586 = vadd.f32 %v1584, %v1585
    %v1587 = vrot.slane %v1586, 4
    %v1588 = vadd.f32 %v1586, %v1587
    %v1589 = vrot.slane %v1588, 2
    %v1590 = vadd.f32 %v1588, %v1589
    %v1591 = vrot.slane %v1590, 1
    %v1592 = vadd.f32 %v1590, %v1591
    %v1593 = vsel %vm1582, %v1496, 0.0
    %v1594 = vsel %vm1583, %v1497, 0.0
    %v1595 = vadd.f32 %v1593, %v1594
    %v1596 = vrot.slane %v1595, 4
    %v1597 = vadd.f32 %v1595, %v1596
    %v1598 = vrot.slane %v1597, 2
    %v1599 = vadd.f32 %v1597, %v1598
    %v1600 = vrot.slane %v1599, 1
    %v1601 = vadd.f32 %v1599, %v1600
    %v1602 = vand.u32 2147483647, %v1592
    %vm1603 = vcmp.lt.f32.partialorder %v1602, 1e-30
    %v1604 = vsel %vm1603, 1e-30, %v1592
    %v1605 = vrcp.pop %v1604
    %v1606 = vmul.f32 %v1604, %v1605
    %v1607 = vsub.f32 2.0, %v1606
    %v1608 = vmul.f32 %v1605, %v1607
    %v1609 = vmul.f32 %v1570, %v1608
    %v1610 = vmul.f32 %v1575, %v1608
    %v1611 = vmul.f32 %v1601, %v1609
    %v1612 = vmul.f32 %v1601, %v1610
    %v1613 = vsub.f32 %v1496, %v1611
    %v1614 = vsub.f32 %v1497, %v1612
    %v1615 = vsel %vm1500, %v1609, %v1613
    %v1616 = vsel %vm1500, %v1610, %v1614
    %vm1617 = vcmp.eq.s32.totalorder %v55, 7
    %v1618 = vsel %vm1617, 1, 0
    %vm1619 = vcmp.eq.s32.totalorder %v1618, 1
    %v1620 = vsel %vm1619, %v1615, 0.0
    %v1621 = vsel %vm1619, %v1616, 0.0
    %1622 = vmatprep.subr.mxu0 0.0
    %1623 = vmatpush1.msra.mxu0 %v773
    %1624 = vmatprep.subr.mxu0 0.0
    %1625 = vmatpush1.msra.mxu0 %v774
    %1626 = vmatprep.subr.mxu0 0.0
    %1627 = vmatpush1.msra.mxu0 %v775
    %1628 = vmatprep.subr.mxu0 0.0
    %1629 = vmatpush1.msra.mxu0 %v776
    %1630 = vmatprep.subr.mxu0 0.0
    %1631 = vmatpush1.msra.mxu0 %v777
    %1632 = vmatprep.subr.mxu0 0.0
    %1633 = vmatpush1.msra.mxu0 %v778
    %1634 = vmatprep.subr.mxu0 0.0
    %1635 = vmatpush1.msra.mxu0 %v779
    %1636 = vmatprep.subr.mxu0 0.0
    %1637 = vmatpush1.msra.mxu0 %v780
    %1638 = vmatprep.subr.mxu0 0.0
    %1639 = vmatpush1.msra.mxu0 %v781
    %1640 = vmatprep.subr.mxu0 0.0
    %1641 = vmatpush1.msra.mxu0 %v782
    %1642 = vmatprep.subr.mxu0 0.0
    %1643 = vmatpush1.msra.mxu0 %v783
    %1644 = vmatprep.subr.mxu0 0.0
    %1645 = vmatpush1.msra.mxu0 %v784
    %1646 = vmatprep.subr.mxu0 0.0
    %1647 = vmatpush1.msra.mxu0 %v785
    %1648 = vmatprep.subr.mxu0 0.0
    %1649 = vmatpush1.msra.mxu0 %v786
    %1650 = vmatprep.subr.mxu0 0.0
    %1651 = vmatpush1.msra.mxu0 %v787
    %1652 = vmatprep.subr.mxu0 0.0
    %1653 = vmatpush1.msra.mxu0 %v788
    %1654 = vmatprep.subr.mxu0 0.0
    %1655 = vmatpush1.msra.mxu0 0.0
    %1656 = vmatprep.subr.mxu0 0.0
    %1657 = vmatpush1.msra.mxu0 0.0
    %1658 = vmatprep.subr.mxu0 0.0
    %1659 = vmatpush1.msra.mxu0 0.0
    %1660 = vmatprep.subr.mxu0 0.0
    %1661 = vmatpush1.msra.mxu0 0.0
    %1662 = vmatprep.subr.mxu0 0.0
    %1663 = vmatpush1.msra.mxu0 0.0
    %1664 = vmatprep.subr.mxu0 0.0
    %1665 = vmatpush1.msra.mxu0 0.0
    %1666 = vmatprep.subr.mxu0 0.0
    %1667 = vmatpush1.msra.mxu0 0.0
    %1668 = vmatprep.subr.mxu0 0.0
    %1669 = vmatpush1.msra.mxu0 0.0
    %1670 = vmatprep.subr.mxu0 0.0
    %1671 = vmatpush1.msra.mxu0 0.0
    %1672 = vmatprep.subr.mxu0 0.0
    %1673 = vmatpush1.msra.mxu0 0.0
    %1674 = vmatprep.subr.mxu0 0.0
    %1675 = vmatpush1.msra.mxu0 0.0
    %1676 = vmatprep.subr.mxu0 0.0
    %1677 = vmatpush1.msra.mxu0 0.0
    %1678 = vmatprep.subr.mxu0 0.0
    %1679 = vmatpush1.msra.mxu0 0.0
    %1680 = vmatprep.subr.mxu0 0.0
    %1681 = vmatpush1.msra.mxu0 0.0
    %1682 = vmatprep.subr.mxu0 0.0
    %1683 = vmatpush1.msra.mxu0 0.0
    %1684 = vmatprep.subr.mxu0 0.0
    %1685 = vmatpush1.msra.mxu0 0.0
    %1686 = vmatprep.mubr.f32.mxu0 0.0
    %1687 = vmatmul.mubr.f32.gmra.mrb[0].mxu0 %v1620
    %v1688 = vpop.f32.mrb[0].mxu0
    %v1689 = vadd.f32 0.0, %v1688
    %v1690 = vpop.f32.mrb[0].mxu0
    %1691 = vmatprep.mubr.f32.mxu0 0.0
    %1692 = vmatmul.mubr.f32.gmra.mrb[0].mxu0 %v1621
    %v1693 = vpop.f32.mrb[0].mxu0
    %v1694 = vadd.f32 0.0, %v1693
    %v1695 = vpop.f32.mrb[0].mxu0
    %1696 = vdwg.mxu0
    %vm1697 = vcmp.eq.s32.totalorder %v57, 7
    %vm1698 = vcmp.eq.s32.totalorder %v58, 7
    %v1699 = vsel %vm1697, 1, 0
    %v1700 = vsel %vm1698, 1, 0
    %vm1701 = vcmp.eq.s32.totalorder %v1699, 1
    %vm1702 = vcmp.eq.s32.totalorder %v1700, 1
    %v1703 = vsel %vm1701, %v1689, 0.0
    %v1704 = vsel %vm1702, %v1694, 0.0
    %v1705 = vadd.f32 %v1703, %v1704
    %v1706 = vrot.slane %v1705, 4
    %v1707 = vadd.f32 %v1705, %v1706
    %v1708 = vrot.slane %v1707, 2
    %v1709 = vadd.f32 %v1707, %v1708
    %v1710 = vrot.slane %v1709, 1
    %v1711 = vadd.f32 %v1709, %v1710
    %v1712 = vsel %vm1701, %v1615, 0.0
    %v1713 = vsel %vm1702, %v1616, 0.0
    %v1714 = vadd.f32 %v1712, %v1713
    %v1715 = vrot.slane %v1714, 4
    %v1716 = vadd.f32 %v1714, %v1715
    %v1717 = vrot.slane %v1716, 2
    %v1718 = vadd.f32 %v1716, %v1717
    %v1719 = vrot.slane %v1718, 1
    %v1720 = vadd.f32 %v1718, %v1719
    %v1721 = vand.u32 2147483647, %v1711
    %vm1722 = vcmp.lt.f32.partialorder %v1721, 1e-30
    %v1723 = vsel %vm1722, 1e-30, %v1711
    %v1724 = vrcp.pop %v1723
    %v1725 = vmul.f32 %v1723, %v1724
    %v1726 = vsub.f32 2.0, %v1725
    %v1727 = vmul.f32 %v1724, %v1726
    %v1728 = vmul.f32 %v1689, %v1727
    %v1729 = vmul.f32 %v1694, %v1727
    %v1730 = vmul.f32 %v1720, %v1728
    %v1731 = vmul.f32 %v1720, %v1729
    %v1732 = vsub.f32 %v1615, %v1730
    %v1733 = vsub.f32 %v1616, %v1731
    %v1734 = vsel %vm1619, %v1728, %v1732
    %v1735 = vsel %vm1619, %v1729, %v1733
    %v1736 = vsel %vm764, %v1734, 0.0
    %v1737 = vsel %vm765, %v1735, 0.0
    %v1738 = vadd.f32 %v1736, %v1737
    %v1739 = vrot.slane %v1738, 4
    %v1740 = vadd.f32 %v1738, %v1739
    %v1741 = vrot.slane %v1740, 2
    %v1742 = vadd.f32 %v1740, %v1741
    %v1743 = vrot.slane %v1742, 1
    %v1744 = vadd.f32 %v1742, %v1743
    %1745 = vst [vmem:[#allocation5] sm:$0x1] %v1744
    // Predicated region
    $region42: #{tpu_custom_call.1} parent=1 // pred_check
      _
    $region43: #{tpu_custom_call.1} parent=1 // pred_check_branch
      %1747 = sbr.rel (0) target = $region45
    $region44: #{tpu_custom_call.1} parent=1 // pred_region
      %s1749 = ssub.s32 16, 16
      %1750 = vsyncadd [#allocation4], %s1749
      %s1752 = sshll.u32 [#allocation5], 4
      %s1753 = int_to_ptr.vmem [resolvable:$true] %s1752
      %1755 = dma.vmem_to_hbm [thread:$0]  %s1753, 16, %s9, [#allocation4]
    $region45: #{tpu_custom_call.1} parent=1 // pred_fallthru
      _
    // Predicated region
    $region46: #{tpu_custom_call.1} parent=1 // pred_check
      _
    $region47: #{tpu_custom_call.1} parent=1 // pred_check_branch
      %1757 = sbr.rel (0) target = $region49
    $region48: #{tpu_custom_call.1} parent=1 // pred_region
      %1758 = dma.done [#allocation4], 16
    $region49: #{tpu_custom_call.1} parent=1 // pred_fallthru
      _
    %1759 = vsyncpa [#allocation3], 1
    %1760 = vsyncpa [#allocation4], 1

</llo_original>
